<compile_context>
chip_gen: v7x
topology: tpu7x:2x2x1
jax: 0.10.0
libtpu: 0.0.40
codegen_flags: <defaults>
</compile_context>

<pallas_src>
import functools

import jax
import jax.numpy as jnp
from jax.experimental import pallas as pl
from jax.experimental.pallas import tpu as pltpu


LANE = 128                               # lane width / minimum tile
SUB_K = 128                              # in-kernel kv sub-block width (vreg friendly)
PREF_TILE_A = 512                        # preferred Kernel A node tile
PREF_TILE_Q = 256                        # preferred Kernel B query tile
PREF_TILE_K = 512                        # preferred Kernel B kv DMA tile
VMEM_LIMIT = 48 * 1024 * 1024            # <= 64 MiB physical VMEM on v7x

ATOM_VOCABS = [16, 8, 4]                 # synthetic per-feature vocab sizes (AtomEncoder)
BOND_VOCABS = [8, 4]                     # synthetic per-feature vocab sizes (BondEncoder)
NEG_INF = -1e9


def _round_up(x, m):
    return (x + m - 1) // m * m


def _pick_tile(n, pref):
    """Largest multiple-of-128 tile <= pref that divides n (n is a multiple of 128)."""
    t = min(pref, n)
    while n % t != 0:
        t -= LANE
    return t


# ----------------------------- Kernel A: GIN MLP + LN + fused QKV -----------------------------

def _gin_ln_qkv_kernel(x_ref, agg_ref, w1_ref, b1_ref, w2_ref, b2_ref,
                       g_ref, beta_ref, wqkv_ref, bqkv_ref,
                       xg_ref, q_ref, kv_ref, *, one_plus_eps, hidden, ln_eps, q_scale):
    x = x_ref[...]                                           # (TN, H) f32
    h = one_plus_eps * x + agg_ref[...]                      # GIN: (1+eps)*x + sum relu(x_j + e)
    h = jnp.dot(h.astype(jnp.bfloat16), w1_ref[...],
                preferred_element_type=jnp.float32) + b1_ref[...]
    # TODO(synk): BatchNorm1d taken in eval mode (running stats 0/1, affine 1/0) -> identity.
    h = jnp.maximum(h, 0.0)
    xg = jnp.dot(h.astype(jnp.bfloat16), w2_ref[...],
                 preferred_element_type=jnp.float32) + b2_ref[...]

    # pre-LayerNorm (f32); F.dropout(p=0.5) is identity in eval mode.
    mu = jnp.mean(xg, axis=-1, keepdims=True)
    var = jnp.mean(jnp.square(xg - mu), axis=-1, keepdims=True)
    xg = (xg - mu) * jax.lax.rsqrt(var + ln_eps) * g_ref[...] + beta_ref[...]
    xg_ref[...] = xg

    # fused Q/K/V projection of the layer input x0 (== x here); q pre-scaled.
    qkv = jnp.dot(x.astype(jnp.bfloat16), wqkv_ref[...],
                  preferred_element_type=jnp.float32) + bqkv_ref[...]
    q_ref[...] = (qkv[:, :hidden] * q_scale).astype(jnp.bfloat16)
    kv_ref[...] = qkv[:, hidden:].astype(jnp.bfloat16)


def gin_ln_qkv_layer(x, agg, lp, *, one_plus_eps, num_heads, tile_n, ln_eps=1e-5):
    Np, H = x.shape
    q_scale = 1.0 / float(H // num_heads) ** 0.5
    row = lambda i: (i, 0)
    const = lambda i: (0, 0)
    kernel = functools.partial(_gin_ln_qkv_kernel, one_plus_eps=float(one_plus_eps),
                               hidden=H, ln_eps=ln_eps, q_scale=q_scale)
    return pl.pallas_call(
        kernel,
        grid=(Np // tile_n,),
        in_specs=[
            pl.BlockSpec((tile_n, H), row),          # x
            pl.BlockSpec((tile_n, H), row),          # agg
            pl.BlockSpec((H, 2 * H), const),         # gin_w1 (bf16)
            pl.BlockSpec((1, 2 * H), const),         # gin_b1
            pl.BlockSpec((2 * H, H), const),         # gin_w2 (bf16)
            pl.BlockSpec((1, H), const),             # gin_b2
            pl.BlockSpec((1, H), const),             # ln gamma
            pl.BlockSpec((1, H), const),             # ln beta
            pl.BlockSpec((H, 3 * H), const),         # wqkv (bf16)
            pl.BlockSpec((1, 3 * H), const),         # bqkv
        ],
        out_specs=(
            pl.BlockSpec((tile_n, H), row),          # xg (GIN+LN branch, f32)
            pl.BlockSpec((tile_n, H), row),          # q  (bf16, pre-scaled)
            pl.BlockSpec((tile_n, 2 * H), row),      # kv (bf16)
        ),
        out_shape=(
            jax.ShapeDtypeStruct((Np, H), jnp.float32),
            jax.ShapeDtypeStruct((Np, H), jnp.bfloat16),
            jax.ShapeDtypeStruct((Np, 2 * H), jnp.bfloat16),
        ),
        compiler_params=pltpu.CompilerParams(
            dimension_semantics=("parallel",),
            vmem_limit_bytes=VMEM_LIMIT),
    )(x, agg,
      lp["gin_w1"], lp["gin_b1"], lp["gin_w2"], lp["gin_b2"],
      lp["ln_g"], lp["ln_b"], lp["wqkv"], lp["bqkv"])


# ---------------- Kernel B: band-restricted masked MHA + O-proj + FFN + residuals ----------------

def _attn_ffn_kernel(kv_lo_ref, kv_hi_ref,                  # scalar-prefetch (SMEM)
                     bq_ref, bk_ref, q_ref, kv_ref, x0_ref, xg_ref,
                     wo_ref, bo_ref, wf1_ref, bf1_ref, wf2_ref, bf2_ref,
                     o_ref, m_sc, l_sc, acc_sc, *, num_heads, sub_k):
    i = pl.program_id(0)
    j = pl.program_id(1)
    H = q_ref.shape[-1]
    Dh = H // num_heads
    tile_k = kv_ref.shape[0]

    @pl.when(j == 0)
    def _():
        m_sc[...] = jnp.full(m_sc.shape, -jnp.inf, jnp.float32)
        l_sc[...] = jnp.zeros(l_sc.shape, jnp.float32)
        acc_sc[...] = jnp.zeros(acc_sc.shape, jnp.float32)

    # Only kv tiles inside the (block-diagonal) band of this query tile do any work.
    in_band = jnp.logical_and(j >= kv_lo_ref[i], j <= kv_hi_ref[i])

    @pl.when(in_band)
    def _():
        q = q_ref[...]                     # (TQ, H)  bf16 (pre-scaled)
        kv = kv_ref[...]                   # (TK, 2H) bf16
        k = kv[:, :H]
        v = kv[:, H:]
        bq = bq_ref[...]                   # (TQ, 1)  int32
        bk = bk_ref[...]                   # (1, TK)  int32
        q_heads = [q[:, h * Dh:(h + 1) * Dh] for h in range(num_heads)]

        for ks in range(tile_k // sub_k):
            ksl = slice(ks * sub_k, (ks + 1) * sub_k)
            # same-graph additive mask built in-kernel (int32 compare).
            bias = jnp.where(bq == bk[:, ksl], 0.0, NEG_INF)   # (TQ, sub_k) f32
            k_sub = k[ksl, :]
            v_sub = v[ksl, :]
            for h in range(num_heads):
                hsl = slice(h * Dh, (h + 1) * Dh)
                s = jax.lax.dot_general(q_heads[h], k_sub[:, hsl],
                                        (((1,), (1,)), ((), ())),
                                        preferred_element_type=jnp.float32)
                s = s + bias                                   # (TQ, sub_k) f32
                # lane-broadcast online softmax state (full-vreg VPU ops).
                m_prev = m_sc[h]                               # (TQ, 128)
                m_new = jnp.maximum(m_prev, jnp.max(s, axis=-1, keepdims=True))
                alpha = jnp.exp(m_prev - m_new)                # (TQ, 128)
                # TODO(synk): on v6e/v7x exp((s - m).astype(bf16)) would use the packed
                #             bf16 EUP path; kept f32 here for v5e compatibility.
                p = jnp.exp(s - m_new[:, :1])                  # (TQ, sub_k) f32
                l_sc[h] = alpha * l_sc[h] + jnp.sum(p, axis=-1, keepdims=True)
                acc_sc[h] = alpha[:, :Dh] * acc_sc[h] + jnp.dot(
                    p.astype(jnp.bfloat16), v_sub[:, hsl],
                    preferred_element_type=jnp.float32)
                m_sc[h] = m_new

    @pl.when(j == pl.num_programs(1) - 1)
    def _():
        inv_l = pl.reciprocal(l_sc[...], approx=True)          # EUP slot, (heads, TQ, 128)
        acc = acc_sc[...] * inv_l[:, :, :Dh]                   # (heads, TQ, Dh)
        attn = jnp.concatenate([acc[h] for h in range(num_heads)], axis=-1)  # (TQ, H)
        o = jnp.dot(attn.astype(jnp.bfloat16), wo_ref[...],
                    preferred_element_type=jnp.float32) + bo_ref[...]
        t = x0_ref[...] + o                                    # residual (layer_norm=False)
        f = jnp.dot(t.astype(jnp.bfloat16), wf1_ref[...],
                    preferred_element_type=jnp.float32) + bf1_ref[...]
        f = jnp.maximum(f, 0.0)
        f = jnp.dot(f.astype(jnp.bfloat16), wf2_ref[...],
                    preferred_element_type=jnp.float32) + bf2_ref[...]
        t = t + f
        x_new = xg_ref[...] + t                                # x = pre_ln(GIN(x)) + transformer(x0)
        x_new = jnp.where(bq_ref[...] >= 0, x_new, 0.0)        # zero padded node rows
        o_ref[...] = x_new


def attn_ffn_layer(kv_lo, kv_hi, batch_col, batch_row, q, kv, x0, xg, lp,
                   *, num_heads, tile_q, tile_k):
    Np, H = x0.shape
    nq, nk = Np // tile_q, Np // tile_k
    kernel = functools.partial(_attn_ffn_kernel, num_heads=num_heads,
                               sub_k=min(SUB_K, tile_k))

    qrow = lambda i, j, lo, hi: (i, 0)
    const = lambda i, j, lo, hi: (0, 0)

    def kv_map(i, j, lo, hi):
        # clamp into the band: out-of-band steps repeat the previous block (DMA elided)
        return (jnp.maximum(jnp.minimum(j, hi[i]), lo[i]), 0)

    def bk_map(i, j, lo, hi):
        return (0, jnp.maximum(jnp.minimum(j, hi[i]), lo[i]))

    grid_spec = pltpu.PrefetchScalarGridSpec(
        num_scalar_prefetch=2,
        grid=(nq, nk),
        in_specs=[
            pl.BlockSpec((tile_q, 1), qrow),         # batch ids (query column, int32)
            pl.BlockSpec((1, tile_k), bk_map),       # batch ids (key row, int32)
            pl.BlockSpec((tile_q, H), qrow),         # q  (bf16)
            pl.BlockSpec((tile_k, 2 * H), kv_map),   # kv (bf16)
            pl.BlockSpec((tile_q, H), qrow),         # x0 (residual, f32)
            pl.BlockSpec((tile_q, H), qrow),         # xg (GIN+LN branch, f32)
            pl.BlockSpec((H, H), const),             # wo (bf16)
            pl.BlockSpec((1, H), const),             # bo
            pl.BlockSpec((H, 2 * H), const),         # wf1 (bf16)
            pl.BlockSpec((1, 2 * H), const),         # bf1
            pl.BlockSpec((2 * H, H), const),         # wf2 (bf16)
            pl.BlockSpec((1, H), const),             # bf2
        ],
        out_specs=pl.BlockSpec((tile_q, H), qrow),
        scratch_shapes=[
            pltpu.VMEM((num_heads, tile_q, LANE), jnp.float32),          # running max (lane-bcast)
            pltpu.VMEM((num_heads, tile_q, LANE), jnp.float32),          # running denom
            pltpu.VMEM((num_heads, tile_q, H // num_heads), jnp.float32),  # attn accumulator
        ])

    return pl.pallas_call(
        kernel,
        grid_spec=grid_spec,
        out_shape=jax.ShapeDtypeStruct((Np, H), jnp.float32),
        compiler_params=pltpu.CompilerParams(
            dimension_semantics=("parallel", "arbitrary"),
            vmem_limit_bytes=VMEM_LIMIT),
    )(kv_lo, kv_hi, batch_col, batch_row, q, kv, x0, xg,
      lp["wo"], lp["bo"], lp["wf1"], lp["bf1"], lp["wf2"], lp["bf2"])


# --------------------------- readout (mean pool) + lin2, one small kernel ---------------------------

def _pool_lin2_kernel(pool_ref, feats_ref, w_ref, b_ref, y_ref):
    g = jnp.dot(pool_ref[...], feats_ref[...], preferred_element_type=jnp.float32)
    y_ref[...] = jnp.dot(g.astype(jnp.bfloat16), w_ref[...],
                         preferred_element_type=jnp.float32) + b_ref[...]


def pool_lin2(pool, feats, w_bf16, b):
    B = pool.shape[0]
    C = w_bf16.shape[1]
    return pl.pallas_call(
        _pool_lin2_kernel,
        out_shape=jax.ShapeDtypeStruct((B, C), jnp.float32),
        in_specs=[pl.BlockSpec(memory_space=pltpu.MemorySpace.VMEM)] * 4,
        out_specs=pl.BlockSpec(memory_space=pltpu.MemorySpace.VMEM),
    )(pool.astype(jnp.bfloat16), feats.astype(jnp.bfloat16), w_bf16, b)


# ------------------------------ parameters ------------------------------

def init_params(key, hidden, out_channels, num_layers):
    ks = iter(jax.random.split(key, 64))

    def w(shape, scale=0.1):
        return jax.random.normal(next(ks), shape, jnp.float32) * scale

    def wb(shape, scale=0.1):               # MXU weights pre-cast to bf16 once
        return w(shape, scale).astype(jnp.bfloat16)

    params = {
        "atom_emb": w((sum(ATOM_VOCABS), hidden)),
        "bond_emb": w((sum(BOND_VOCABS), hidden)),
        "lin2_w": wb((hidden, out_channels)),
        "lin2_b": jnp.zeros((1, out_channels), jnp.float32),
        "layers": [],
    }
    for _ in range(num_layers):
        lp = {
            "gin_eps": 0.0,                                   # static (eval-mode fold)
            "gin_w1": wb((hidden, 2 * hidden)),
            "gin_b1": jnp.zeros((1, 2 * hidden), jnp.float32),
            "gin_w2": wb((2 * hidden, hidden)),
            "gin_b2": jnp.zeros((1, hidden), jnp.float32),
            "ln_g": jnp.ones((1, hidden), jnp.float32),
            "ln_b": jnp.zeros((1, hidden), jnp.float32),
            "wqkv": wb((hidden, 3 * hidden)),                 # fused Q|K|V projection
            "bqkv": jnp.zeros((1, 3 * hidden), jnp.float32),
            "wo": wb((hidden, hidden)), "bo": jnp.zeros((1, hidden), jnp.float32),
            "wf1": wb((hidden, 2 * hidden)), "bf1": jnp.zeros((1, 2 * hidden), jnp.float32),
            "wf2": wb((2 * hidden, hidden)), "bf2": jnp.zeros((1, hidden), jnp.float32),
        }
        params["layers"].append(lp)
    return params


# ------------------------------ forward ------------------------------

def _embed_sum(table, idx_cat, vocabs):
    """Sum of per-feature categorical embeddings via sparse gather (no one-hot matmul)."""
    offs, acc = [], 0
    for v in vocabs:
        offs.append(acc)
        acc += v
    idx = idx_cat + jnp.array(offs, jnp.int32)[None, :]       # [N, F]
    return jnp.take(table, idx, axis=0).sum(axis=1)           # [N, H]


def _kv_bands(batch, batch_pad, num_graphs, Np, tile_q, tile_k):
    """Per-q-tile inclusive kv-tile band [lo, hi] covering all same-graph keys
    (assumes the PyG invariant that `batch` is sorted / graphs are contiguous)."""
    nq = Np // tile_q
    bmat = batch_pad.reshape(nq, tile_q)
    g_lo = bmat[:, 0]                                          # first graph in tile (or -1)
    g_hi = jnp.max(bmat, axis=1)                               # last graph in tile (or -1)
    gids = jnp.arange(num_graphs, dtype=jnp.int32)
    first_node = jnp.searchsorted(batch, gids, side="left")
    last_node = jnp.searchsorted(batch, gids, side="right") - 1
    lo_node = first_node[jnp.clip(g_lo, 0, num_graphs - 1)]
    hi_node = last_node[jnp.clip(g_hi, 0, num_graphs - 1)]
    t_start = jnp.arange(nq) * tile_q
    diag_lo = t_start // tile_k                                # always include the diagonal
    diag_hi = (t_start + tile_q - 1) // tile_k                 # (padded rows self-attend there)
    valid = g_lo >= 0
    kv_lo = jnp.where(valid, jnp.minimum(lo_node // tile_k, diag_lo), diag_lo)
    kv_hi = jnp.where(valid, jnp.maximum(hi_node // tile_k, diag_hi), diag_hi)
    return kv_lo.astype(jnp.int32), kv_hi.astype(jnp.int32)


def graph_transformer_forward(params, x_cat, edge_index, edge_attr_cat, batch,
                              num_graphs, num_heads):
    N = x_cat.shape[0]
    H = params["atom_emb"].shape[1]
    Np = _round_up(max(N, LANE), LANE)
    tile_n = _pick_tile(Np, PREF_TILE_A)
    tile_q = _pick_tile(Np, PREF_TILE_Q)
    tile_k = _pick_tile(Np, PREF_TILE_K)

    # AtomEncoder / BondEncoder (sparse gathers, XLA glue).
    x = _embed_sum(params["atom_emb"], x_cat, ATOM_VOCABS)              # [N, H]
    eattr = _embed_sum(params["bond_emb"], edge_attr_cat, BOND_VOCABS)  # [E, H]

    # Pad nodes to a multiple of the tile; padded rows carry batch id -1 (isolated).
    x = jnp.pad(x, ((0, Np - N), (0, 0)))
    batch = batch.astype(jnp.int32)
    batch_pad = jnp.concatenate([batch, jnp.full((Np - N,), -1, jnp.int32)])
    batch_col = batch_pad.reshape(Np, 1)
    batch_row = batch_pad.reshape(1, Np)

    # Sort edges by destination once -> sorted scatter in segment_sum.
    src, dst = edge_index[0].astype(jnp.int32), edge_index[1].astype(jnp.int32)
    order = jnp.argsort(dst)
    src, dst, eattr = src[order], dst[order], eattr[order]

    kv_lo, kv_hi = _kv_bands(batch, batch_pad, num_graphs, Np, tile_q, tile_k)

    out = jnp.zeros((Np, H), jnp.float32)
    for lp in params["layers"]:
        x0 = x
        # GIN neighborhood aggregation: sparse gather + sorted segment-sum (XLA glue).
        msg = jnp.maximum(jnp.take(x, src, axis=0) + eattr, 0.0)        # [E, H]
        agg = jax.ops.segment_sum(msg, dst, num_segments=Np,
                                  indices_are_sorted=True)              # [Np, H]

        # Kernel A: GIN MLP + pre-LayerNorm + fused QKV projection (bf16 q/kv out).
        xg, q, kv = gin_ln_qkv_layer(x, agg, lp, one_plus_eps=1.0 + lp["gin_eps"],
                                     num_heads=num_heads, tile_n=tile_n)

        # Kernel B: band-restricted masked flash attention + O-proj + FFN + residuals.
        x = attn_ffn_layer(kv_lo, kv_hi, batch_col, batch_row, q, kv, x0, xg, lp,
                           num_heads=num_heads, tile_q=tile_q, tile_k=tile_k)

        out = out + x

    # global_mean_pool as a tiny pool-matrix matmul fused with lin2.
    oh_b = jax.nn.one_hot(batch_pad, num_graphs, dtype=jnp.float32)     # padded rows -> 0
    counts = jnp.maximum(jnp.sum(oh_b, axis=0), 1.0)
    pool = (oh_b / counts[None, :]).T                                   # [B, Np]
    return pool_lin2(pool, out, params["lin2_w"], params["lin2_b"])     # [B, out_channels]


# ------------------------------ demo ------------------------------

if __name__ == "__main__":
    hidden_channels = 128      # lane-dense hidden (multiple of 128)
    out_channels = 2
    num_heads = 4              # head_dim = 32
    num_layers = 1             # layer_sequence = ['SelfAtt']

    num_graphs = 2
    nodes_per_graph = 8
    N = num_graphs * nodes_per_graph

    key = jax.random.PRNGKey(0)
    k_x, k_e, k_p = jax.random.split(key, 3)

    # node categorical features [N, 3]
    x_cat = jnp.stack(
        [jax.random.randint(jax.random.fold_in(k_x, f), (N,), 0, v)
         for f, v in enumerate(ATOM_VOCABS)], axis=1).astype(jnp.int32)

    # ring graph within each component, both directions -> E = 2 * N edges
    src_list, dst_list = [], []
    for g in range(num_graphs):
        off = g * nodes_per_graph
        for i in range(nodes_per_graph):
            a, b = off + i, off + (i + 1) % nodes_per_graph
            src_list += [a, b]
            dst_list += [b, a]
    edge_index = jnp.array([src_list, dst_list], dtype=jnp.int32)   # [2, E]
    E = edge_index.shape[1]

    # edge categorical features [E, 2]
    edge_attr_cat = jnp.stack(
        [jax.random.randint(jax.random.fold_in(k_e, f), (E,), 0, v)
         for f, v in enumerate(BOND_VOCABS)], axis=1).astype(jnp.int32)

    batch = jnp.repeat(jnp.arange(num_graphs, dtype=jnp.int32), nodes_per_graph)  # [N]

    params = init_params(k_p, hidden_channels, out_channels, num_layers)

    out = graph_transformer_forward(params, x_cat, edge_index, edge_attr_cat,
                                    batch, num_graphs, num_heads)
    out = jax.block_until_ready(out)
    assert out.shape == (num_graphs, out_channels)
    assert bool(jnp.all(jnp.isfinite(out)))
    print("KERNEL_OK")
</pallas_src>

<mosaic_0001>
module attributes {stable_mosaic.version = 11 : i64} {
  func.func @_gin_ln_qkv_kernel(%arg0: i32, %arg1: memref<128x128xf32, #tpu.memory_space<vmem>>, %arg2: memref<128x128xf32, #tpu.memory_space<vmem>>, %arg3: memref<128x256xbf16, #tpu.memory_space<vmem>>, %arg4: memref<1x256xf32, #tpu.memory_space<vmem>>, %arg5: memref<256x128xbf16, #tpu.memory_space<vmem>>, %arg6: memref<1x128xf32, #tpu.memory_space<vmem>>, %arg7: memref<1x128xf32, #tpu.memory_space<vmem>>, %arg8: memref<1x128xf32, #tpu.memory_space<vmem>>, %arg9: memref<128x384xbf16, #tpu.memory_space<vmem>>, %arg10: memref<1x384xf32, #tpu.memory_space<vmem>>, %arg11: memref<128x128xf32, #tpu.memory_space<vmem>>, %arg12: memref<128x128xbf16, #tpu.memory_space<vmem>>, %arg13: memref<128x256xbf16, #tpu.memory_space<vmem>>) attributes {dimension_semantics = [#tpu.dimension_semantics<parallel>], iteration_bounds = array<i64: 1>, scalar_prefetch = 0 : i64, scratch_operands = 0 : i64, tpu.core_type = #tpu.core_type<tc>, window_params = [{transform_indices = @transform_0, window_bounds = array<i64: 128, 128>}, {transform_indices = @transform_1, window_bounds = array<i64: 128, 128>}, {pipeline_mode = #tpu.pipeline_mode<synchronous>, transform_indices = @transform_2, window_bounds = array<i64: 128, 256>}, {pipeline_mode = #tpu.pipeline_mode<synchronous>, transform_indices = @transform_3, window_bounds = array<i64: 1, 256>}, {pipeline_mode = #tpu.pipeline_mode<synchronous>, transform_indices = @transform_4, window_bounds = array<i64: 256, 128>}, {pipeline_mode = #tpu.pipeline_mode<synchronous>, transform_indices = @transform_5, window_bounds = array<i64: 1, 128>}, {pipeline_mode = #tpu.pipeline_mode<synchronous>, transform_indices = @transform_6, window_bounds = array<i64: 1, 128>}, {pipeline_mode = #tpu.pipeline_mode<synchronous>, transform_indices = @transform_7, window_bounds = array<i64: 1, 128>}, {pipeline_mode = #tpu.pipeline_mode<synchronous>, transform_indices = @transform_8, window_bounds = array<i64: 128, 384>}, {pipeline_mode = #tpu.pipeline_mode<synchronous>, transform_indices = @transform_9, window_bounds = array<i64: 1, 384>}, {transform_indices = @transform_10, window_bounds = array<i64: 128, 128>}, {transform_indices = @transform_11, window_bounds = array<i64: 128, 128>}, {transform_indices = @transform_12, window_bounds = array<i64: 128, 256>}]} {
    %c0 = arith.constant 0 : index
    %c0_0 = arith.constant 0 : index
    %0 = vector.load %arg1[%c0, %c0_0] : memref<128x128xf32, #tpu.memory_space<vmem>>, vector<128x128xf32>
    %cst = arith.constant 1.000000e+00 : f32
    %1 = vector.broadcast %cst : f32 to vector<128x128xf32>
    %2 = arith.mulf %1, %0 : vector<128x128xf32>
    %c0_1 = arith.constant 0 : index
    %c0_2 = arith.constant 0 : index
    %3 = vector.load %arg2[%c0_1, %c0_2] : memref<128x128xf32, #tpu.memory_space<vmem>>, vector<128x128xf32>
    %4 = arith.addf %2, %3 : vector<128x128xf32>
    %5 = arith.truncf %4 : vector<128x128xf32> to vector<128x128xbf16>
    %c0_3 = arith.constant 0 : index
    %c0_4 = arith.constant 0 : index
    %6 = vector.load %arg3[%c0_3, %c0_4] : memref<128x256xbf16, #tpu.memory_space<vmem>>, vector<128x256xbf16>
    %cst_5 = arith.constant dense<0.000000e+00> : vector<128x256xf32>
    %7 = tpu.matmul %5, %6, %cst_5 {dimension_numbers = #tpu.dot_dimension_numbers<[1], [0], [0], [1], [0, 0, 1, 1], [], []>} : vector<128x128xbf16>, vector<128x256xbf16>, vector<128x256xf32> -> vector<128x256xf32>
    %c0_6 = arith.constant 0 : index
    %c0_7 = arith.constant 0 : index
    %8 = vector.load %arg4[%c0_6, %c0_7] : memref<1x256xf32, #tpu.memory_space<vmem>>, vector<1x256xf32>
    %9 = vector.broadcast %8 : vector<1x256xf32> to vector<128x256xf32>
    %10 = arith.addf %7, %9 : vector<128x256xf32>
    %cst_8 = arith.constant 0.000000e+00 : f32
    %11 = vector.broadcast %cst_8 : f32 to vector<128x256xf32>
    %12 = arith.maximumf %10, %11 : vector<128x256xf32>
    %13 = arith.truncf %12 : vector<128x256xf32> to vector<128x256xbf16>
    %c0_9 = arith.constant 0 : index
    %c0_10 = arith.constant 0 : index
    %14 = vector.load %arg5[%c0_9, %c0_10] : memref<256x128xbf16, #tpu.memory_space<vmem>>, vector<256x128xbf16>
    %cst_11 = arith.constant dense<0.000000e+00> : vector<128x128xf32>
    %15 = tpu.matmul %13, %14, %cst_11 {dimension_numbers = #tpu.dot_dimension_numbers<[1], [0], [0], [1], [0, 0, 1, 1], [], []>} : vector<128x256xbf16>, vector<256x128xbf16>, vector<128x128xf32> -> vector<128x128xf32>
    %c0_12 = arith.constant 0 : index
    %c0_13 = arith.constant 0 : index
    %16 = vector.load %arg6[%c0_12, %c0_13] : memref<1x128xf32, #tpu.memory_space<vmem>>, vector<1x128xf32>
    %17 = vector.broadcast %16 : vector<1x128xf32> to vector<128x128xf32>
    %18 = arith.addf %15, %17 : vector<128x128xf32>
    %cst_14 = arith.constant dense<0.000000e+00> : vector<128xf32>
    %19 = vector.multi_reduction <add>, %18, %cst_14 [1] : vector<128x128xf32> to vector<128xf32>
    %20 = vector.shape_cast %19 : vector<128xf32> to vector<128x1xf32>
    %cst_15 = arith.constant 1.280000e+02 : f32
    %21 = vector.broadcast %cst_15 : f32 to vector<128x1xf32>
    %22 = arith.divf %20, %21 : vector<128x1xf32>
    %23 = vector.broadcast %22 : vector<128x1xf32> to vector<128x128xf32>
    %24 = arith.subf %18, %23 : vector<128x128xf32>
    %25 = arith.mulf %24, %24 : vector<128x128xf32>
    %cst_16 = arith.constant dense<0.000000e+00> : vector<128xf32>
    %26 = vector.multi_reduction <add>, %25, %cst_16 [1] : vector<128x128xf32> to vector<128xf32>
    %27 = vector.shape_cast %26 : vector<128xf32> to vector<128x1xf32>
    %cst_17 = arith.constant 1.280000e+02 : f32
    %28 = vector.broadcast %cst_17 : f32 to vector<128x1xf32>
    %29 = arith.divf %27, %28 : vector<128x1xf32>
    %30 = vector.broadcast %22 : vector<128x1xf32> to vector<128x128xf32>
    %31 = arith.subf %18, %30 : vector<128x128xf32>
    %cst_18 = arith.constant 9.99999974E-6 : f32
    %32 = vector.broadcast %cst_18 : f32 to vector<128x1xf32>
    %33 = arith.addf %29, %32 : vector<128x1xf32>
    %34 = math.rsqrt %33 : vector<128x1xf32>
    %35 = vector.broadcast %34 : vector<128x1xf32> to vector<128x128xf32>
    %36 = arith.mulf %31, %35 : vector<128x128xf32>
    %c0_19 = arith.constant 0 : index
    %c0_20 = arith.constant 0 : index
    %37 = vector.load %arg7[%c0_19, %c0_20] : memref<1x128xf32, #tpu.memory_space<vmem>>, vector<1x128xf32>
    %38 = vector.broadcast %37 : vector<1x128xf32> to vector<128x128xf32>
    %39 = arith.mulf %36, %38 : vector<128x128xf32>
    %c0_21 = arith.constant 0 : index
    %c0_22 = arith.constant 0 : index
    %40 = vector.load %arg8[%c0_21, %c0_22] : memref<1x128xf32, #tpu.memory_space<vmem>>, vector<1x128xf32>
    %41 = vector.broadcast %40 : vector<1x128xf32> to vector<128x128xf32>
    %42 = arith.addf %39, %41 : vector<128x128xf32>
    %c0_23 = arith.constant 0 : index
    %c0_24 = arith.constant 0 : index
    %43 = vector.load %arg11[%c0_23, %c0_24] : memref<128x128xf32, #tpu.memory_space<vmem>>, vector<128x128xf32>
    tpu.vector_store %arg11[%c0_23, %c0_24], %42 {strides = array<i32>} : memref<128x128xf32, #tpu.memory_space<vmem>>, vector<128x128xf32>,
    %44 = arith.truncf %0 : vector<128x128xf32> to vector<128x128xbf16>
    %c0_25 = arith.constant 0 : index
    %c0_26 = arith.constant 0 : index
    %45 = vector.load %arg9[%c0_25, %c0_26] : memref<128x384xbf16, #tpu.memory_space<vmem>>, vector<128x384xbf16>
    %cst_27 = arith.constant dense<0.000000e+00> : vector<128x384xf32>
    %46 = tpu.matmul %44, %45, %cst_27 {dimension_numbers = #tpu.dot_dimension_numbers<[1], [0], [0], [1], [0, 0, 1, 1], [], []>} : vector<128x128xbf16>, vector<128x384xbf16>, vector<128x384xf32> -> vector<128x384xf32>
    %c0_28 = arith.constant 0 : index
    %c0_29 = arith.constant 0 : index
    %47 = vector.load %arg10[%c0_28, %c0_29] : memref<1x384xf32, #tpu.memory_space<vmem>>, vector<1x384xf32>
    %48 = vector.broadcast %47 : vector<1x384xf32> to vector<128x384xf32>
    %49 = arith.addf %46, %48 : vector<128x384xf32>
    %50 = vector.extract_strided_slice %49 {offsets = [0, 0], sizes = [128, 128], strides = [1, 1]} : vector<128x384xf32> to vector<128x128xf32>
    %cst_30 = arith.constant 0.176776692 : f32
    %51 = vector.broadcast %cst_30 : f32 to vector<128x128xf32>
    %52 = arith.mulf %50, %51 : vector<128x128xf32>
    %53 = arith.truncf %52 : vector<128x128xf32> to vector<128x128xbf16>
    %c0_31 = arith.constant 0 : index
    %c0_32 = arith.constant 0 : index
    %54 = vector.load %arg12[%c0_31, %c0_32] : memref<128x128xbf16, #tpu.memory_space<vmem>>, vector<128x128xbf16>
    tpu.vector_store %arg12[%c0_31, %c0_32], %53 {strides = array<i32>} : memref<128x128xbf16, #tpu.memory_space<vmem>>, vector<128x128xbf16>,
    %55 = vector.extract_strided_slice %49 {offsets = [0, 128], sizes = [128, 256], strides = [1, 1]} : vector<128x384xf32> to vector<128x256xf32>
    %56 = arith.truncf %55 : vector<128x256xf32> to vector<128x256xbf16>
    %c0_33 = arith.constant 0 : index
    %c0_34 = arith.constant 0 : index
    %57 = vector.load %arg13[%c0_33, %c0_34] : memref<128x256xbf16, #tpu.memory_space<vmem>>, vector<128x256xbf16>
    tpu.vector_store %arg13[%c0_33, %c0_34], %56 {strides = array<i32>} : memref<128x256xbf16, #tpu.memory_space<vmem>>, vector<128x256xbf16>,
    return
  }
  func.func @transform_0(%arg0: i32) -> (i32, i32) {
    %c0_i32 = arith.constant 0 : i32
    %c0_i32_0 = arith.constant 0 : i32
    return %arg0, %c0_i32 : i32, i32
  }
  func.func @transform_1(%arg0: i32) -> (i32, i32) {
    %c0_i32 = arith.constant 0 : i32
    %c0_i32_0 = arith.constant 0 : i32
    return %arg0, %c0_i32 : i32, i32
  }
  func.func @transform_2(%arg0: i32) -> (i32, i32) {
    %c0_i32 = arith.constant 0 : i32
    %c0_i32_0 = arith.constant 0 : i32
    %c0_i32_1 = arith.constant 0 : i32
    return %c0_i32, %c0_i32_0 : i32, i32
  }
  func.func @transform_3(%arg0: i32) -> (i32, i32) {
    %c0_i32 = arith.constant 0 : i32
    %c0_i32_0 = arith.constant 0 : i32
    %c0_i32_1 = arith.constant 0 : i32
    return %c0_i32, %c0_i32_0 : i32, i32
  }
  func.func @transform_4(%arg0: i32) -> (i32, i32) {
    %c0_i32 = arith.constant 0 : i32
    %c0_i32_0 = arith.constant 0 : i32
    %c0_i32_1 = arith.constant 0 : i32
    return %c0_i32, %c0_i32_0 : i32, i32
  }
  func.func @transform_5(%arg0: i32) -> (i32, i32) {
    %c0_i32 = arith.constant 0 : i32
    %c0_i32_0 = arith.constant 0 : i32
    %c0_i32_1 = arith.constant 0 : i32
    return %c0_i32, %c0_i32_0 : i32, i32
  }
  func.func @transform_6(%arg0: i32) -> (i32, i32) {
    %c0_i32 = arith.constant 0 : i32
    %c0_i32_0 = arith.constant 0 : i32
    %c0_i32_1 = arith.constant 0 : i32
    return %c0_i32, %c0_i32_0 : i32, i32
  }
  func.func @transform_7(%arg0: i32) -> (i32, i32) {
    %c0_i32 = arith.constant 0 : i32
    %c0_i32_0 = arith.constant 0 : i32
    %c0_i32_1 = arith.constant 0 : i32
    return %c0_i32, %c0_i32_0 : i32, i32
  }
  func.func @transform_8(%arg0: i32) -> (i32, i32) {
    %c0_i32 = arith.constant 0 : i32
    %c0_i32_0 = arith.constant 0 : i32
    %c0_i32_1 = arith.constant 0 : i32
    return %c0_i32, %c0_i32_0 : i32, i32
  }
  func.func @transform_9(%arg0: i32) -> (i32, i32) {
    %c0_i32 = arith.constant 0 : i32
    %c0_i32_0 = arith.constant 0 : i32
    %c0_i32_1 = arith.constant 0 : i32
    return %c0_i32, %c0_i32_0 : i32, i32
  }
  func.func @transform_10(%arg0: i32) -> (i32, i32) {
    %c0_i32 = arith.constant 0 : i32
    %c0_i32_0 = arith.constant 0 : i32
    return %arg0, %c0_i32 : i32, i32
  }
  func.func @transform_11(%arg0: i32) -> (i32, i32) {
    %c0_i32 = arith.constant 0 : i32
    %c0_i32_0 = arith.constant 0 : i32
    return %arg0, %c0_i32 : i32, i32
  }
  func.func @transform_12(%arg0: i32) -> (i32, i32) {
    %c0_i32 = arith.constant 0 : i32
    %c0_i32_0 = arith.constant 0 : i32
    return %arg0, %c0_i32 : i32, i32
  }
}

</mosaic_0001>

<llo_original>
// kernel: tpu_custom_call.1
$region0: #{tpu_custom_call.1}
  #allocation0 [shape = 'u32[]', space=smem, size = 0x4, offset = 0x4, fixed_abs, tag = 'smem constant byte address 0x4 - core index']
  #allocation1 [shape = 'u32[144,128]{1,0:T(1,128)}', space=vmem, size = 0x12000, scoped, tag = 'internal scratch']
  %s0 = inlined_call_operand.hbm [shape: f32[128,128], index: 0, kind: input, shape index: {}]
  %s1 = inlined_call_operand.hbm [shape: f32[128,128], index: 1, kind: input, shape index: {}]
  %s2 = inlined_call_operand.hbm [shape: bf16[128,256], index: 2, kind: input, shape index: {}]
  %s3 = inlined_call_operand.vmem [shape: f32[1,256], index: 3, kind: input, shape index: {}]
  %s4 = inlined_call_operand.hbm [shape: bf16[256,128], index: 4, kind: input, shape index: {}]
  %s5 = inlined_call_operand.vmem [shape: f32[1,128], index: 5, kind: input, shape index: {}]
  %s6 = inlined_call_operand.vmem [shape: f32[1,128], index: 6, kind: input, shape index: {}]
  %s7 = inlined_call_operand.vmem [shape: f32[1,128], index: 7, kind: input, shape index: {}]
  %s8 = inlined_call_operand.hbm [shape: bf16[128,384], index: 8, kind: input, shape index: {}]
  %s9 = inlined_call_operand.vmem [shape: f32[1,384], index: 9, kind: input, shape index: {}]
  %s10 = inlined_call_operand.hbm [shape: f32[128,128], index: 10, kind: output, shape index: {0}]
  %s11 = inlined_call_operand.hbm [shape: bf16[128,128], index: 11, kind: output, shape index: {1}]
  %s12 = inlined_call_operand.hbm [shape: bf16[128,256], index: 12, kind: output, shape index: {2}]
  %13 = xla_tuple %s10, %s11, %s12
  %s14 = sld [smem:[#allocation0]]
  $region86: #{tpu_custom_call.1} parent=0
    _
  %s16 = ssub.s32 1, %s14
  %s17 = scalar_select 0, %s16, %s14
  $region1: #{tpu_custom_call.1} parent=0
    #allocation2 [shape = 'u8[65536]{0}', space=vmem, size = 0x10000, scoped, tag = 'input window, operand 0, single buffered']
    #allocation3 [shape = 's32[1]{0}', space=sflag, size = 0x4, scoped, tag = 'scoped memory for tpu_custom_call.1']
    #allocation4 [shape = 's32[1]{0}', space=sflag, size = 0x4, scoped, tag = 'scoped memory for tpu_custom_call.1']
    #allocation5 [shape = 'u8[65536]{0}', space=vmem, size = 0x10000, scoped, tag = 'input window, operand 1, single buffered']
    #allocation6 [shape = 's32[1]{0}', space=sflag, size = 0x4, scoped, tag = 'scoped memory for tpu_custom_call.1']
    #allocation7 [shape = 'u8[65536]{0}', space=vmem, size = 0x10000, scoped, tag = 'input window, operand 2, single buffered']
    #allocation8 [shape = 'u8[65536]{0}', space=vmem, size = 0x10000, scoped, tag = 'input window, operand 4, single buffered']
    #allocation9 [shape = 's32[1]{0}', space=sflag, size = 0x4, scoped, tag = 'scoped memory for tpu_custom_call.1']
    #allocation10 [shape = 'u8[98304]{0}', space=vmem, size = 0x18000, scoped, tag = 'input window, operand 8, single buffered']
    #allocation11 [shape = 'u8[65536]{0}', space=vmem, size = 0x10000, scoped, tag = 'output window, operand 0, single buffered']
    #allocation12 [shape = 'u8[32768]{0}', space=vmem, size = 0x8000, scoped, tag = 'output window, operand 1, single buffered']
    #allocation13 [shape = 's32[1]{0}', space=sflag, size = 0x4, scoped, tag = 'scoped memory for tpu_custom_call.1']
    #allocation14 [shape = 'u8[65536]{0}', space=vmem, size = 0x10000, scoped, tag = 'output window, operand 2, single buffered']
    %18 = vsyncpa [#allocation3], 0
    %19 = vsyncpa [#allocation6], 0
    %20 = vsyncpa [#allocation9], 0
    %21 = vsyncpa [#allocation4], 0
    %22 = vsyncpa [#allocation13], 0
    // Predicated region
    $region2: #{tpu_custom_call.1} parent=1 // pred_check
      _
    $region3: #{tpu_custom_call.1} parent=1 // pred_check_branch
      %24 = sbr.rel (0) target = $region5
    $region4: #{tpu_custom_call.1} parent=1 // pred_region
      %s26 = ssub.s32 2048, 2048
      %27 = vsyncadd [#allocation3], %s26
      %s28 = sshll.u32 [#allocation2], 4
      %s29 = int_to_ptr.vmem [resolvable:$true] %s28
      %34 = dma.hbm_to_vmem [thread:$0]  %s0, 2048, %s29, [#allocation3], 128, 128, 8
    $region5: #{tpu_custom_call.1} parent=1 // pred_fallthru
      _
    // Predicated region
    $region6: #{tpu_custom_call.1} parent=1 // pred_check
      _
    $region7: #{tpu_custom_call.1} parent=1 // pred_check_branch
      %36 = sbr.rel (0) target = $region9
    $region8: #{tpu_custom_call.1} parent=1 // pred_region
      %s38 = ssub.s32 2048, 2048
      %39 = vsyncadd [#allocation6], %s38
      %s40 = sshll.u32 [#allocation5], 4
      %s41 = int_to_ptr.vmem [resolvable:$true] %s40
      %46 = dma.hbm_to_vmem [thread:$0]  %s1, 2048, %s41, [#allocation6], 128, 128, 8
    $region9: #{tpu_custom_call.1} parent=1 // pred_fallthru
      _
    // Predicated region
    $region10: #{tpu_custom_call.1} parent=1 // pred_check
      _
    $region11: #{tpu_custom_call.1} parent=1 // pred_check_branch
      %48 = sbr.rel (0) target = $region13
    $region12: #{tpu_custom_call.1} parent=1 // pred_region
      %s50 = ssub.s32 2048, 2048
      %51 = vsyncadd [#allocation6], %s50
      %s52 = sshll.u32 [#allocation7], 4
      %s53 = int_to_ptr.vmem [resolvable:$true] %s52
      %58 = dma.hbm_to_vmem [thread:$0]  %s2, 2048, %s53, [#allocation6], 128, 128, 8
    $region13: #{tpu_custom_call.1} parent=1 // pred_fallthru
      _
    // Predicated region
    $region14: #{tpu_custom_call.1} parent=1 // pred_check
      _
    $region15: #{tpu_custom_call.1} parent=1 // pred_check_branch
      %60 = sbr.rel (0) target = $region17
    $region16: #{tpu_custom_call.1} parent=1 // pred_region
      _
    $region17: #{tpu_custom_call.1} parent=1 // pred_fallthru
      _
    // Predicated region
    $region18: #{tpu_custom_call.1} parent=1 // pred_check
      _
    $region19: #{tpu_custom_call.1} parent=1 // pred_check_branch
      %62 = sbr.rel (0) target = $region21
    $region20: #{tpu_custom_call.1} parent=1 // pred_region
      %s64 = ssub.s32 2048, 2048
      %65 = vsyncadd [#allocation9], %s64
      %s66 = sshll.u32 [#allocation8], 4
      %s67 = int_to_ptr.vmem [resolvable:$true] %s66
      %72 = dma.hbm_to_vmem [thread:$0]  %s4, 2048, %s67, [#allocation9], 64, 64, 4
    $region21: #{tpu_custom_call.1} parent=1 // pred_fallthru
      _
    // Predicated region
    $region22: #{tpu_custom_call.1} parent=1 // pred_check
      _
    $region23: #{tpu_custom_call.1} parent=1 // pred_check_branch
      %74 = sbr.rel (0) target = $region25
    $region24: #{tpu_custom_call.1} parent=1 // pred_region
      _
    $region25: #{tpu_custom_call.1} parent=1 // pred_fallthru
      _
    // Predicated region
    $region26: #{tpu_custom_call.1} parent=1 // pred_check
      _
    $region27: #{tpu_custom_call.1} parent=1 // pred_check_branch
      %76 = sbr.rel (0) target = $region29
    $region28: #{tpu_custom_call.1} parent=1 // pred_region
      _
    $region29: #{tpu_custom_call.1} parent=1 // pred_fallthru
      _
    // Predicated region
    $region30: #{tpu_custom_call.1} parent=1 // pred_check
      _
    $region31: #{tpu_custom_call.1} parent=1 // pred_check_branch
      %78 = sbr.rel (0) target = $region33
    $region32: #{tpu_custom_call.1} parent=1 // pred_region
      _
    $region33: #{tpu_custom_call.1} parent=1 // pred_fallthru
      _
    // Predicated region
    $region34: #{tpu_custom_call.1} parent=1 // pred_check
      _
    $region35: #{tpu_custom_call.1} parent=1 // pred_check_branch
      %80 = sbr.rel (0) target = $region37
    $region36: #{tpu_custom_call.1} parent=1 // pred_region
      %s82 = ssub.s32 3072, 3072
      %83 = vsyncadd [#allocation9], %s82
      %s84 = sshll.u32 [#allocation10], 4
      %s85 = int_to_ptr.vmem [resolvable:$true] %s84
      %90 = dma.hbm_to_vmem [thread:$0]  %s8, 3072, %s85, [#allocation9], 192, 192, 12
    $region37: #{tpu_custom_call.1} parent=1 // pred_fallthru
      _
    // Predicated region
    $region38: #{tpu_custom_call.1} parent=1 // pred_check
      _
    $region39: #{tpu_custom_call.1} parent=1 // pred_check_branch
      %92 = sbr.rel (0) target = $region41
    $region40: #{tpu_custom_call.1} parent=1 // pred_region
      _
    $region41: #{tpu_custom_call.1} parent=1 // pred_fallthru
      _
    // Predicated region
    $region42: #{tpu_custom_call.1} parent=1 // pred_check
      _
    $region43: #{tpu_custom_call.1} parent=1 // pred_check_branch
      %94 = sbr.rel (0) target = $region45
    $region44: #{tpu_custom_call.1} parent=1 // pred_region
      %95 = dma.done [#allocation3], 2048
    $region45: #{tpu_custom_call.1} parent=1 // pred_fallthru
      _
    // Predicated region
    $region46: #{tpu_custom_call.1} parent=1 // pred_check
      _
    $region47: #{tpu_custom_call.1} parent=1 // pred_check_branch
      %97 = sbr.rel (0) target = $region49
    $region48: #{tpu_custom_call.1} parent=1 // pred_region
      %98 = dma.done [#allocation6], 2048
    $region49: #{tpu_custom_call.1} parent=1 // pred_fallthru
      _
    // Predicated region
    $region50: #{tpu_custom_call.1} parent=1 // pred_check
      _
    $region51: #{tpu_custom_call.1} parent=1 // pred_check_branch
      %100 = sbr.rel (0) target = $region53
    $region52: #{tpu_custom_call.1} parent=1 // pred_region
      %101 = dma.done [#allocation6], 2048
    $region53: #{tpu_custom_call.1} parent=1 // pred_fallthru
      _
    // Predicated region
    $region54: #{tpu_custom_call.1} parent=1 // pred_check
      _
    $region55: #{tpu_custom_call.1} parent=1 // pred_check_branch
      %103 = sbr.rel (0) target = $region57
    $region56: #{tpu_custom_call.1} parent=1 // pred_region
      %104 = dma.done [#allocation9], 2048
    $region57: #{tpu_custom_call.1} parent=1 // pred_fallthru
      _
    // Predicated region
    $region58: #{tpu_custom_call.1} parent=1 // pred_check
      _
    $region59: #{tpu_custom_call.1} parent=1 // pred_check_branch
      %106 = sbr.rel (0) target = $region61
    $region60: #{tpu_custom_call.1} parent=1 // pred_region
      %107 = dma.done [#allocation9], 3072
    $region61: #{tpu_custom_call.1} parent=1 // pred_fallthru
      _
    %v109 = vld [vmem:[#allocation2] sm:$0xff]
    %v110 = vld [vmem:[#allocation2 + $0x8] sm:$0xff]
    %v111 = vld [vmem:[#allocation2 + $0x10] sm:$0xff]
    %v112 = vld [vmem:[#allocation2 + $0x18] sm:$0xff]
    %v113 = vld [vmem:[#allocation2 + $0x20] sm:$0xff]
    %v114 = vld [vmem:[#allocation2 + $0x28] sm:$0xff]
    %v115 = vld [vmem:[#allocation2 + $0x30] sm:$0xff]
    %v116 = vld [vmem:[#allocation2 + $0x38] sm:$0xff]
    %v117 = vld [vmem:[#allocation2 + $0x40] sm:$0xff]
    %v118 = vld [vmem:[#allocation2 + $0x48] sm:$0xff]
    %v119 = vld [vmem:[#allocation2 + $0x50] sm:$0xff]
    %v120 = vld [vmem:[#allocation2 + $0x58] sm:$0xff]
    %v121 = vld [vmem:[#allocation2 + $0x60] sm:$0xff]
    %v122 = vld [vmem:[#allocation2 + $0x68] sm:$0xff]
    %v123 = vld [vmem:[#allocation2 + $0x70] sm:$0xff]
    %v124 = vld [vmem:[#allocation2 + $0x78] sm:$0xff]
    %v125 = vld [vmem:[#allocation5] sm:$0xff]
    %v126 = vld [vmem:[#allocation5 + $0x8] sm:$0xff]
    %v127 = vld [vmem:[#allocation5 + $0x10] sm:$0xff]
    %v128 = vld [vmem:[#allocation5 + $0x18] sm:$0xff]
    %v129 = vld [vmem:[#allocation5 + $0x20] sm:$0xff]
    %v130 = vld [vmem:[#allocation5 + $0x28] sm:$0xff]
    %v131 = vld [vmem:[#allocation5 + $0x30] sm:$0xff]
    %v132 = vld [vmem:[#allocation5 + $0x38] sm:$0xff]
    %v133 = vld [vmem:[#allocation5 + $0x40] sm:$0xff]
    %v134 = vld [vmem:[#allocation5 + $0x48] sm:$0xff]
    %v135 = vld [vmem:[#allocation5 + $0x50] sm:$0xff]
    %v136 = vld [vmem:[#allocation5 + $0x58] sm:$0xff]
    %v137 = vld [vmem:[#allocation5 + $0x60] sm:$0xff]
    %v138 = vld [vmem:[#allocation5 + $0x68] sm:$0xff]
    %v139 = vld [vmem:[#allocation5 + $0x70] sm:$0xff]
    %v140 = vld [vmem:[#allocation5 + $0x78] sm:$0xff]
    %v141 = vadd.f32 %v109, %v125
    %v142 = vadd.f32 %v110, %v126
    %v143 = vadd.f32 %v111, %v127
    %v144 = vadd.f32 %v112, %v128
    %v145 = vadd.f32 %v113, %v129
    %v146 = vadd.f32 %v114, %v130
    %v147 = vadd.f32 %v115, %v131
    %v148 = vadd.f32 %v116, %v132
    %v149 = vadd.f32 %v117, %v133
    %v150 = vadd.f32 %v118, %v134
    %v151 = vadd.f32 %v119, %v135
    %v152 = vadd.f32 %v120, %v136
    %v153 = vadd.f32 %v121, %v137
    %v154 = vadd.f32 %v122, %v138
    %v155 = vadd.f32 %v123, %v139
    %v156 = vadd.f32 %v124, %v140
    %v157 = vpack.c.bf16 %v142, %v141
    %v158 = vpack.c.bf16 %v144, %v143
    %v159 = vpack.c.bf16 %v146, %v145
    %v160 = vpack.c.bf16 %v148, %v147
    %v161 = vpack.c.bf16 %v150, %v149
    %v162 = vpack.c.bf16 %v152, %v151
    %v163 = vpack.c.bf16 %v154, %v153
    %v164 = vpack.c.bf16 %v156, %v155
    %v165 = vld [vmem:[#allocation7] sm:$0xff]
    %v166 = vld [vmem:[#allocation7 + $0x8] sm:$0xff]
    %v167 = vld [vmem:[#allocation7 + $0x10] sm:$0xff]
    %v168 = vld [vmem:[#allocation7 + $0x18] sm:$0xff]
    %v169 = vld [vmem:[#allocation7 + $0x20] sm:$0xff]
    %v170 = vld [vmem:[#allocation7 + $0x28] sm:$0xff]
    %v171 = vld [vmem:[#allocation7 + $0x30] sm:$0xff]
    %v172 = vld [vmem:[#allocation7 + $0x38] sm:$0xff]
    %v173 = vld [vmem:[#allocation7 + $0x40] sm:$0xff]
    %v174 = vld [vmem:[#allocation7 + $0x48] sm:$0xff]
    %v175 = vld [vmem:[#allocation7 + $0x50] sm:$0xff]
    %v176 = vld [vmem:[#allocation7 + $0x58] sm:$0xff]
    %v177 = vld [vmem:[#allocation7 + $0x60] sm:$0xff]
    %v178 = vld [vmem:[#allocation7 + $0x68] sm:$0xff]
    %v179 = vld [vmem:[#allocation7 + $0x70] sm:$0xff]
    %v180 = vld [vmem:[#allocation7 + $0x78] sm:$0xff]
    %v181 = vld [vmem:[%s3] sm:$0x3]
    %v183 = vlaneseq
    %v184 = vshrl.u32 %v183, 7
    %v185 = vsub.s32 0, %v184
    %v186 = vrot.slane %v181, %v185
    %v187 = vlaneseq
    %v188 = vshrl.u32 %v187, 7
    %v189 = vsub.s32 1, %v188
    %v190 = vrot.slane %v181, %v189
    %v209 = vunpack.c.l.b16 %v165
    %v210 = vunpack.c.h.b16 %v165
    %v211 = vunpack.c.l.b16 %v166
    %v212 = vunpack.c.h.b16 %v166
    %v213 = vunpack.c.l.b16 %v167
    %v214 = vunpack.c.h.b16 %v167
    %v215 = vunpack.c.l.b16 %v168
    %v216 = vunpack.c.h.b16 %v168
    %v217 = vunpack.c.l.b16 %v169
    %v218 = vunpack.c.h.b16 %v169
    %v219 = vunpack.c.l.b16 %v170
    %v220 = vunpack.c.h.b16 %v170
    %v221 = vunpack.c.l.b16 %v171
    %v222 = vunpack.c.h.b16 %v171
    %v223 = vunpack.c.l.b16 %v172
    %v224 = vunpack.c.h.b16 %v172
    %v225 = vunpack.c.l.b16 %v173
    %v226 = vunpack.c.h.b16 %v173
    %v227 = vunpack.c.l.b16 %v174
    %v228 = vunpack.c.h.b16 %v174
    %v229 = vunpack.c.l.b16 %v175
    %v230 = vunpack.c.h.b16 %v175
    %v231 = vunpack.c.l.b16 %v176
    %v232 = vunpack.c.h.b16 %v176
    %v233 = vunpack.c.l.b16 %v177
    %v234 = vunpack.c.h.b16 %v177
    %v235 = vunpack.c.l.b16 %v178
    %v236 = vunpack.c.h.b16 %v178
    %v237 = vunpack.c.l.b16 %v179
    %v238 = vunpack.c.h.b16 %v179
    %v239 = vunpack.c.l.b16 %v180
    %v240 = vunpack.c.h.b16 %v180
    %v241 = vpack.c.b16 %v211, %v209
    %v242 = vpack.c.b16 %v212, %v210
    %v243 = vpack.c.b16 %v215, %v213
    %v244 = vpack.c.b16 %v216, %v214
    %v245 = vpack.c.b16 %v219, %v217
    %v246 = vpack.c.b16 %v220, %v218
    %v247 = vpack.c.b16 %v223, %v221
    %v248 = vpack.c.b16 %v224, %v222
    %v249 = vpack.c.b16 %v227, %v225
    %v250 = vpack.c.b16 %v228, %v226
    %v251 = vpack.c.b16 %v231, %v229
    %v252 = vpack.c.b16 %v232, %v230
    %v253 = vpack.c.b16 %v235, %v233
    %v254 = vpack.c.b16 %v236, %v234
    %v255 = vpack.c.b16 %v239, %v237
    %v256 = vpack.c.b16 %v240, %v238
    %273 = vmatprep.subr.bf16.mxu0 %v242
    %274 = vmatpush1.bf16.msra.mxu0 %v241
    %275 = vmatprep.subr.bf16.mxu0 %v244
    %276 = vmatpush1.bf16.msra.mxu0 %v243
    %277 = vmatprep.subr.bf16.mxu0 %v246
    %278 = vmatpush1.bf16.msra.mxu0 %v245
    %279 = vmatprep.subr.bf16.mxu0 %v248
    %280 = vmatpush1.bf16.msra.mxu0 %v247
    %281 = vmatprep.subr.bf16.mxu0 %v250
    %282 = vmatpush1.bf16.msra.mxu0 %v249
    %283 = vmatprep.subr.bf16.mxu0 %v252
    %284 = vmatpush1.bf16.msra.mxu0 %v251
    %285 = vmatprep.subr.bf16.mxu0 %v254
    %286 = vmatpush1.bf16.msra.mxu0 %v253
    %287 = vmatprep.subr.bf16.mxu0 %v256
    %288 = vmatpush1.bf16.msra.mxu0 %v255
    %289 = vmatprep.subr.bf16.mxu0 0
    %290 = vmatpush1.bf16.msra.mxu0 0
    %291 = vmatprep.subr.bf16.mxu0 0
    %292 = vmatpush1.bf16.msra.mxu0 0
    %293 = vmatprep.subr.bf16.mxu0 0
    %294 = vmatpush1.bf16.msra.mxu0 0
    %295 = vmatprep.subr.bf16.mxu0 0
    %296 = vmatpush1.bf16.msra.mxu0 0
    %297 = vmatprep.subr.bf16.mxu0 0
    %298 = vmatpush1.bf16.msra.mxu0 0
    %299 = vmatprep.subr.bf16.mxu0 0
    %300 = vmatpush1.bf16.msra.mxu0 0
    %301 = vmatprep.subr.bf16.mxu0 0
    %302 = vmatpush1.bf16.msra.mxu0 0
    %303 = vmatprep.subr.bf16.mxu0 0
    %304 = vmatpush1.bf16.msra.mxu0 0
    %305 = vmatprep.mubr.bf16.mxu0 0
    %306 = vmatmul.mubr.bf16.gmra.mrb[0].mxu0 %v157
    %v307 = vpop.f32.mrb[0].mxu0
    %v308 = vadd.f32 %v186, %v307
    %v309 = vpop.f32.mrb[0].mxu0
    %v310 = vadd.f32 %v190, %v309
    %v311 = vpop.f32.mrb[0].mxu0
    %v312 = vadd.f32 %v186, %v311
    %v313 = vpop.f32.mrb[0].mxu0
    %v314 = vadd.f32 %v190, %v313
    %315 = vmatprep.mubr.bf16.mxu0 0
    %316 = vmatmul.mubr.bf16.gmra.mrb[0].mxu0 %v158
    %v317 = vpop.f32.mrb[0].mxu0
    %v318 = vadd.f32 %v186, %v317
    %v319 = vpop.f32.mrb[0].mxu0
    %v320 = vadd.f32 %v190, %v319
    %v321 = vpop.f32.mrb[0].mxu0
    %v322 = vadd.f32 %v186, %v321
    %v323 = vpop.f32.mrb[0].mxu0
    %v324 = vadd.f32 %v190, %v323
    %325 = vmatprep.mubr.bf16.mxu0 0
    %326 = vmatmul.mubr.bf16.gmra.mrb[0].mxu0 %v159
    %v327 = vpop.f32.mrb[0].mxu0
    %v328 = vadd.f32 %v186, %v327
    %v329 = vpop.f32.mrb[0].mxu0
    %v330 = vadd.f32 %v190, %v329
    %v331 = vpop.f32.mrb[0].mxu0
    %v332 = vadd.f32 %v186, %v331
    %v333 = vpop.f32.mrb[0].mxu0
    %v334 = vadd.f32 %v190, %v333
    %335 = vmatprep.mubr.bf16.mxu0 0
    %336 = vmatmul.mubr.bf16.gmra.mrb[0].mxu0 %v160
    %v337 = vpop.f32.mrb[0].mxu0
    %v338 = vadd.f32 %v186, %v337
    %v339 = vpop.f32.mrb[0].mxu0
    %v340 = vadd.f32 %v190, %v339
    %v341 = vpop.f32.mrb[0].mxu0
    %v342 = vadd.f32 %v186, %v341
    %v343 = vpop.f32.mrb[0].mxu0
    %v344 = vadd.f32 %v190, %v343
    %345 = vmatprep.mubr.bf16.mxu0 0
    %346 = vmatmul.mubr.bf16.gmra.mrb[0].mxu0 %v161
    %v347 = vpop.f32.mrb[0].mxu0
    %v348 = vadd.f32 %v186, %v347
    %v349 = vpop.f32.mrb[0].mxu0
    %v350 = vadd.f32 %v190, %v349
    %v351 = vpop.f32.mrb[0].mxu0
    %v352 = vadd.f32 %v186, %v351
    %v353 = vpop.f32.mrb[0].mxu0
    %v354 = vadd.f32 %v190, %v353
    %355 = vmatprep.mubr.bf16.mxu0 0
    %356 = vmatmul.mubr.bf16.gmra.mrb[0].mxu0 %v162
    %v357 = vpop.f32.mrb[0].mxu0
    %v358 = vadd.f32 %v186, %v357
    %v359 = vpop.f32.mrb[0].mxu0
    %v360 = vadd.f32 %v190, %v359
    %v361 = vpop.f32.mrb[0].mxu0
    %v362 = vadd.f32 %v186, %v361
    %v363 = vpop.f32.mrb[0].mxu0
    %v364 = vadd.f32 %v190, %v363
    %365 = vmatprep.mubr.bf16.mxu0 0
    %366 = vmatmul.mubr.bf16.gmra.mrb[0].mxu0 %v163
    %v367 = vpop.f32.mrb[0].mxu0
    %v368 = vadd.f32 %v186, %v367
    %v369 = vpop.f32.mrb[0].mxu0
    %v370 = vadd.f32 %v190, %v369
    %v371 = vpop.f32.mrb[0].mxu0
    %v372 = vadd.f32 %v186, %v371
    %v373 = vpop.f32.mrb[0].mxu0
    %v374 = vadd.f32 %v190, %v373
    %375 = vmatprep.mubr.bf16.mxu0 0
    %376 = vmatmul.mubr.bf16.gmra.mrb[0].mxu0 %v164
    %v377 = vpop.f32.mrb[0].mxu0
    %v378 = vadd.f32 %v186, %v377
    %v379 = vpop.f32.mrb[0].mxu0
    %v380 = vadd.f32 %v190, %v379
    %v381 = vpop.f32.mrb[0].mxu0
    %v382 = vadd.f32 %v186, %v381
    %v383 = vpop.f32.mrb[0].mxu0
    %v384 = vadd.f32 %v190, %v383
    %385 = vdwg.mxu0
    %v386 = vmax.f32 %v308, 0.0
    %v387 = vmax.f32 %v310, 0.0
    %v388 = vmax.f32 %v312, 0.0
    %v389 = vmax.f32 %v314, 0.0
    %v390 = vmax.f32 %v318, 0.0
    %v391 = vmax.f32 %v320, 0.0
    %v392 = vmax.f32 %v322, 0.0
    %v393 = vmax.f32 %v324, 0.0
    %v394 = vmax.f32 %v328, 0.0
    %v395 = vmax.f32 %v330, 0.0
    %v396 = vmax.f32 %v332, 0.0
    %v397 = vmax.f32 %v334, 0.0
    %v398 = vmax.f32 %v338, 0.0
    %v399 = vmax.f32 %v340, 0.0
    %v400 = vmax.f32 %v342, 0.0
    %v401 = vmax.f32 %v344, 0.0
    %v402 = vmax.f32 %v348, 0.0
    %v403 = vmax.f32 %v350, 0.0
    %v404 = vmax.f32 %v352, 0.0
    %v405 = vmax.f32 %v354, 0.0
    %v406 = vmax.f32 %v358, 0.0
    %v407 = vmax.f32 %v360, 0.0
    %v408 = vmax.f32 %v362, 0.0
    %v409 = vmax.f32 %v364, 0.0
    %v410 = vmax.f32 %v368, 0.0
    %v411 = vmax.f32 %v370, 0.0
    %v412 = vmax.f32 %v372, 0.0
    %v413 = vmax.f32 %v374, 0.0
    %v414 = vmax.f32 %v378, 0.0
    %v415 = vmax.f32 %v380, 0.0
    %v416 = vmax.f32 %v382, 0.0
    %v417 = vmax.f32 %v384, 0.0
    %v418 = vpack.c.bf16 %v388, %v386
    %v419 = vpack.c.bf16 %v389, %v387
    %v420 = vpack.c.bf16 %v392, %v390
    %v421 = vpack.c.bf16 %v393, %v391
    %v422 = vpack.c.bf16 %v396, %v394
    %v423 = vpack.c.bf16 %v397, %v395
    %v424 = vpack.c.bf16 %v400, %v398
    %v425 = vpack.c.bf16 %v401, %v399
    %v426 = vpack.c.bf16 %v404, %v402
    %v427 = vpack.c.bf16 %v405, %v403
    %v428 = vpack.c.bf16 %v408, %v406
    %v429 = vpack.c.bf16 %v409, %v407
    %v430 = vpack.c.bf16 %v412, %v410
    %v431 = vpack.c.bf16 %v413, %v411
    %v432 = vpack.c.bf16 %v416, %v414
    %v433 = vpack.c.bf16 %v417, %v415
    %v434 = vld [vmem:[#allocation8] sm:$0xf]
    %v435 = vld [vmem:[#allocation8 + $0x4] sm:$0xf]
    %v436 = vld [vmem:[#allocation8 + $0x8] sm:$0xf]
    %v437 = vld [vmem:[#allocation8 + $0xc] sm:$0xf]
    %v438 = vld [vmem:[#allocation8 + $0x10] sm:$0xf]
    %v439 = vld [vmem:[#allocation8 + $0x14] sm:$0xf]
    %v440 = vld [vmem:[#allocation8 + $0x18] sm:$0xf]
    %v441 = vld [vmem:[#allocation8 + $0x1c] sm:$0xf]
    %v442 = vld [vmem:[#allocation8 + $0x20] sm:$0xf]
    %v443 = vld [vmem:[#allocation8 + $0x24] sm:$0xf]
    %v444 = vld [vmem:[#allocation8 + $0x28] sm:$0xf]
    %v445 = vld [vmem:[#allocation8 + $0x2c] sm:$0xf]
    %v446 = vld [vmem:[#allocation8 + $0x30] sm:$0xf]
    %v447 = vld [vmem:[#allocation8 + $0x34] sm:$0xf]
    %v448 = vld [vmem:[#allocation8 + $0x38] sm:$0xf]
    %v449 = vld [vmem:[#allocation8 + $0x3c] sm:$0xf]
    %v450 = vld [vmem:[#allocation8 + $0x40] sm:$0xf]
    %v451 = vld [vmem:[#allocation8 + $0x44] sm:$0xf]
    %v452 = vld [vmem:[#allocation8 + $0x48] sm:$0xf]
    %v453 = vld [vmem:[#allocation8 + $0x4c] sm:$0xf]
    %v454 = vld [vmem:[#allocation8 + $0x50] sm:$0xf]
    %v455 = vld [vmem:[#allocation8 + $0x54] sm:$0xf]
    %v456 = vld [vmem:[#allocation8 + $0x58] sm:$0xf]
    %v457 = vld [vmem:[#allocation8 + $0x5c] sm:$0xf]
    %v458 = vld [vmem:[#allocation8 + $0x60] sm:$0xf]
    %v459 = vld [vmem:[#allocation8 + $0x64] sm:$0xf]
    %v460 = vld [vmem:[#allocation8 + $0x68] sm:$0xf]
    %v461 = vld [vmem:[#allocation8 + $0x6c] sm:$0xf]
    %v462 = vld [vmem:[#allocation8 + $0x70] sm:$0xf]
    %v463 = vld [vmem:[#allocation8 + $0x74] sm:$0xf]
    %v464 = vld [vmem:[#allocation8 + $0x78] sm:$0xf]
    %v465 = vld [vmem:[#allocation8 + $0x7c] sm:$0xf]
    %v466 = vld [vmem:[%s5] sm:$0x1]
    %v468 = vlaneseq
    %v469 = vshrl.u32 %v468, 7
    %v470 = vsub.s32 0, %v469
    %v471 = vrot.slane %v466, %v470
    %v505 = vunpack.c.l.b16 %v434
    %v506 = vunpack.c.l.b16 %v435
    %v507 = vunpack.c.l.b16 %v436
    %v508 = vunpack.c.l.b16 %v437
    %v509 = vunpack.c.l.b16 %v438
    %v510 = vunpack.c.l.b16 %v439
    %v511 = vunpack.c.l.b16 %v440
    %v512 = vunpack.c.l.b16 %v441
    %v513 = vunpack.c.l.b16 %v442
    %v514 = vunpack.c.l.b16 %v443
    %v515 = vunpack.c.l.b16 %v444
    %v516 = vunpack.c.l.b16 %v445
    %v517 = vunpack.c.l.b16 %v446
    %v518 = vunpack.c.l.b16 %v447
    %v519 = vunpack.c.l.b16 %v448
    %v520 = vunpack.c.l.b16 %v449
    %v521 = vunpack.c.l.b16 %v450
    %v522 = vunpack.c.l.b16 %v451
    %v523 = vunpack.c.l.b16 %v452
    %v524 = vunpack.c.l.b16 %v453
    %v525 = vunpack.c.l.b16 %v454
    %v526 = vunpack.c.l.b16 %v455
    %v527 = vunpack.c.l.b16 %v456
    %v528 = vunpack.c.l.b16 %v457
    %v529 = vunpack.c.l.b16 %v458
    %v530 = vunpack.c.l.b16 %v459
    %v531 = vunpack.c.l.b16 %v460
    %v532 = vunpack.c.l.b16 %v461
    %v533 = vunpack.c.l.b16 %v462
    %v534 = vunpack.c.l.b16 %v463
    %v535 = vunpack.c.l.b16 %v464
    %v536 = vunpack.c.l.b16 %v465
    %v537 = vpack.c.b16 %v506, %v505
    %v538 = vpack.c.b16 %v508, %v507
    %v539 = vpack.c.b16 %v510, %v509
    %v540 = vpack.c.b16 %v512, %v511
    %v541 = vpack.c.b16 %v514, %v513
    %v542 = vpack.c.b16 %v516, %v515
    %v543 = vpack.c.b16 %v518, %v517
    %v544 = vpack.c.b16 %v520, %v519
    %v545 = vpack.c.b16 %v522, %v521
    %v546 = vpack.c.b16 %v524, %v523
    %v547 = vpack.c.b16 %v526, %v525
    %v548 = vpack.c.b16 %v528, %v527
    %v549 = vpack.c.b16 %v530, %v529
    %v550 = vpack.c.b16 %v532, %v531
    %v551 = vpack.c.b16 %v534, %v533
    %v552 = vpack.c.b16 %v536, %v535
    %569 = vmatprep.subr.bf16.mxu0 0
    %570 = vmatpush1.bf16.msra.mxu0 %v537
    %571 = vmatprep.subr.bf16.mxu0 0
    %572 = vmatpush1.bf16.msra.mxu0 %v538
    %573 = vmatprep.subr.bf16.mxu0 0
    %574 = vmatpush1.bf16.msra.mxu0 %v539
    %575 = vmatprep.subr.bf16.mxu0 0
    %576 = vmatpush1.bf16.msra.mxu0 %v540
    %577 = vmatprep.subr.bf16.mxu0 0
    %578 = vmatpush1.bf16.msra.mxu0 %v541
    %579 = vmatprep.subr.bf16.mxu0 0
    %580 = vmatpush1.bf16.msra.mxu0 %v542
    %581 = vmatprep.subr.bf16.mxu0 0
    %582 = vmatpush1.bf16.msra.mxu0 %v543
    %583 = vmatprep.subr.bf16.mxu0 0
    %584 = vmatpush1.bf16.msra.mxu0 %v544
    %585 = vmatprep.subr.bf16.mxu0 0
    %586 = vmatpush1.bf16.msra.mxu0 %v545
    %587 = vmatprep.subr.bf16.mxu0 0
    %588 = vmatpush1.bf16.msra.mxu0 %v546
    %589 = vmatprep.subr.bf16.mxu0 0
    %590 = vmatpush1.bf16.msra.mxu0 %v547
    %591 = vmatprep.subr.bf16.mxu0 0
    %592 = vmatpush1.bf16.msra.mxu0 %v548
    %593 = vmatprep.subr.bf16.mxu0 0
    %594 = vmatpush1.bf16.msra.mxu0 %v549
    %595 = vmatprep.subr.bf16.mxu0 0
    %596 = vmatpush1.bf16.msra.mxu0 %v550
    %597 = vmatprep.subr.bf16.mxu0 0
    %598 = vmatpush1.bf16.msra.mxu0 %v551
    %599 = vmatprep.subr.bf16.mxu0 0
    %600 = vmatpush1.bf16.msra.mxu0 %v552
    %601 = vmatprep.mubr.bf16.mxu0 %v419
    %602 = vmatmul.mubr.bf16.gmra.mrb[0].mxu0 %v418
    %v603 = vpop.f32.mrb[0].mxu0
    %v604 = vadd.f32 %v471, %v603
    %v605 = vpop.f32.mrb[0].mxu0
    %v606 = vpop.f32.mrb[0].mxu0
    %v607 = vadd.f32 %v471, %v606
    %v608 = vpop.f32.mrb[0].mxu0
    %609 = vmatprep.mubr.bf16.mxu0 %v421
    %610 = vmatmul.mubr.bf16.gmra.mrb[0].mxu0 %v420
    %v611 = vpop.f32.mrb[0].mxu0
    %v612 = vadd.f32 %v471, %v611
    %v613 = vpop.f32.mrb[0].mxu0
    %v614 = vpop.f32.mrb[0].mxu0
    %v615 = vadd.f32 %v471, %v614
    %v616 = vpop.f32.mrb[0].mxu0
    %617 = vmatprep.mubr.bf16.mxu0 %v423
    %618 = vmatmul.mubr.bf16.gmra.mrb[0].mxu0 %v422
    %v619 = vpop.f32.mrb[0].mxu0
    %v620 = vadd.f32 %v471, %v619
    %v621 = vpop.f32.mrb[0].mxu0
    %v622 = vpop.f32.mrb[0].mxu0
    %v623 = vadd.f32 %v471, %v622
    %v624 = vpop.f32.mrb[0].mxu0
    %625 = vmatprep.mubr.bf16.mxu0 %v425
    %626 = vmatmul.mubr.bf16.gmra.mrb[0].mxu0 %v424
    %v627 = vpop.f32.mrb[0].mxu0
    %v628 = vadd.f32 %v471, %v627
    %v629 = vpop.f32.mrb[0].mxu0
    %v630 = vpop.f32.mrb[0].mxu0
    %v631 = vadd.f32 %v471, %v630
    %v632 = vpop.f32.mrb[0].mxu0
    %633 = vmatprep.mubr.bf16.mxu0 %v427
    %634 = vmatmul.mubr.bf16.gmra.mrb[0].mxu0 %v426
    %v635 = vpop.f32.mrb[0].mxu0
    %v636 = vadd.f32 %v471, %v635
    %v637 = vpop.f32.mrb[0].mxu0
    %v638 = vpop.f32.mrb[0].mxu0
    %v639 = vadd.f32 %v471, %v638
    %v640 = vpop.f32.mrb[0].mxu0
    %641 = vmatprep.mubr.bf16.mxu0 %v429
    %642 = vmatmul.mubr.bf16.gmra.mrb[0].mxu0 %v428
    %v643 = vpop.f32.mrb[0].mxu0
    %v644 = vadd.f32 %v471, %v643
    %v645 = vpop.f32.mrb[0].mxu0
    %v646 = vpop.f32.mrb[0].mxu0
    %v647 = vadd.f32 %v471, %v646
    %v648 = vpop.f32.mrb[0].mxu0
    %649 = vmatprep.mubr.bf16.mxu0 %v431
    %650 = vmatmul.mubr.bf16.gmra.mrb[0].mxu0 %v430
    %v651 = vpop.f32.mrb[0].mxu0
    %v652 = vadd.f32 %v471, %v651
    %v653 = vpop.f32.mrb[0].mxu0
    %v654 = vpop.f32.mrb[0].mxu0
    %v655 = vadd.f32 %v471, %v654
    %v656 = vpop.f32.mrb[0].mxu0
    %657 = vmatprep.mubr.bf16.mxu0 %v433
    %658 = vmatmul.mubr.bf16.gmra.mrb[0].mxu0 %v432
    %v659 = vpop.f32.mrb[0].mxu0
    %v660 = vadd.f32 %v471, %v659
    %v661 = vpop.f32.mrb[0].mxu0
    %v662 = vpop.f32.mrb[0].mxu0
    %v663 = vadd.f32 %v471, %v662
    %v664 = vpop.f32.mrb[0].mxu0
    %665 = vdwg.mxu0
    %666 = vadd.xlane.f32.xlu0 %v604
    %v667 = vpop.xlane.xlu0 %666
    %668 = vadd.xlane.f32.xlu0 %v607
    %v669 = vpop.xlane.xlu0 %668
    %670 = vadd.xlane.f32.xlu0 %v612
    %v671 = vpop.xlane.xlu0 %670
    %672 = vadd.xlane.f32.xlu0 %v615
    %v673 = vpop.xlane.xlu0 %672
    %674 = vadd.xlane.f32.xlu0 %v620
    %v675 = vpop.xlane.xlu0 %674
    %676 = vadd.xlane.f32.xlu0 %v623
    %v677 = vpop.xlane.xlu0 %676
    %678 = vadd.xlane.f32.xlu0 %v628
    %v679 = vpop.xlane.xlu0 %678
    %680 = vadd.xlane.f32.xlu0 %v631
    %v681 = vpop.xlane.xlu0 %680
    %682 = vadd.xlane.f32.xlu0 %v636
    %v683 = vpop.xlane.xlu0 %682
    %684 = vadd.xlane.f32.xlu0 %v639
    %v685 = vpop.xlane.xlu0 %684
    %686 = vadd.xlane.f32.xlu0 %v644
    %v687 = vpop.xlane.xlu0 %686
    %688 = vadd.xlane.f32.xlu0 %v647
    %v689 = vpop.xlane.xlu0 %688
    %690 = vadd.xlane.f32.xlu0 %v652
    %v691 = vpop.xlane.xlu0 %690
    %692 = vadd.xlane.f32.xlu0 %v655
    %v693 = vpop.xlane.xlu0 %692
    %694 = vadd.xlane.f32.xlu0 %v660
    %v695 = vpop.xlane.xlu0 %694
    %696 = vadd.xlane.f32.xlu0 %v663
    %v697 = vpop.xlane.xlu0 %696
    %v698 = vrcp.pop 128.0
    %v699 = vmul.f32 %v667, %v698
    %v700 = vmul.f32 %v669, %v698
    %v701 = vmul.f32 %v671, %v698
    %v702 = vmul.f32 %v673, %v698
    %v703 = vmul.f32 %v675, %v698
    %v704 = vmul.f32 %v677, %v698
    %v705 = vmul.f32 %v679, %v698
    %v706 = vmul.f32 %v681, %v698
    %v707 = vmul.f32 %v683, %v698
    %v708 = vmul.f32 %v685, %v698
    %v709 = vmul.f32 %v687, %v698
    %v710 = vmul.f32 %v689, %v698
    %v711 = vmul.f32 %v691, %v698
    %v712 = vmul.f32 %v693, %v698
    %v713 = vmul.f32 %v695, %v698
    %v714 = vmul.f32 %v697, %v698
    %v715 = vsub.f32 %v604, %v699
    %v716 = vsub.f32 %v607, %v700
    %v717 = vsub.f32 %v612, %v701
    %v718 = vsub.f32 %v615, %v702
    %v719 = vsub.f32 %v620, %v703
    %v720 = vsub.f32 %v623, %v704
    %v721 = vsub.f32 %v628, %v705
    %v722 = vsub.f32 %v631, %v706
    %v723 = vsub.f32 %v636, %v707
    %v724 = vsub.f32 %v639, %v708
    %v725 = vsub.f32 %v644, %v709
    %v726 = vsub.f32 %v647, %v710
    %v727 = vsub.f32 %v652, %v711
    %v728 = vsub.f32 %v655, %v712
    %v729 = vsub.f32 %v660, %v713
    %v730 = vsub.f32 %v663, %v714
    %v731 = vmul.f32 %v715, %v715
    %v732 = vmul.f32 %v716, %v716
    %v733 = vmul.f32 %v717, %v717
    %v734 = vmul.f32 %v718, %v718
    %v735 = vmul.f32 %v719, %v719
    %v736 = vmul.f32 %v720, %v720
    %v737 = vmul.f32 %v721, %v721
    %v738 = vmul.f32 %v722, %v722
    %v739 = vmul.f32 %v723, %v723
    %v740 = vmul.f32 %v724, %v724
    %v741 = vmul.f32 %v725, %v725
    %v742 = vmul.f32 %v726, %v726
    %v743 = vmul.f32 %v727, %v727
    %v744 = vmul.f32 %v728, %v728
    %v745 = vmul.f32 %v729, %v729
    %v746 = vmul.f32 %v730, %v730
    %747 = vadd.xlane.f32.xlu0 %v731
    %v748 = vpop.xlane.xlu0 %747
    %749 = vadd.xlane.f32.xlu0 %v732
    %v750 = vpop.xlane.xlu0 %749
    %751 = vadd.xlane.f32.xlu0 %v733
    %v752 = vpop.xlane.xlu0 %751
    %753 = vadd.xlane.f32.xlu0 %v734
    %v754 = vpop.xlane.xlu0 %753
    %755 = vadd.xlane.f32.xlu0 %v735
    %v756 = vpop.xlane.xlu0 %755
    %757 = vadd.xlane.f32.xlu0 %v736
    %v758 = vpop.xlane.xlu0 %757
    %759 = vadd.xlane.f32.xlu0 %v737
    %v760 = vpop.xlane.xlu0 %759
    %761 = vadd.xlane.f32.xlu0 %v738
    %v762 = vpop.xlane.xlu0 %761
    %763 = vadd.xlane.f32.xlu0 %v739
    %v764 = vpop.xlane.xlu0 %763
    %765 = vadd.xlane.f32.xlu0 %v740
    %v766 = vpop.xlane.xlu0 %765
    %767 = vadd.xlane.f32.xlu0 %v741
    %v768 = vpop.xlane.xlu0 %767
    %769 = vadd.xlane.f32.xlu0 %v742
    %v770 = vpop.xlane.xlu0 %769
    %771 = vadd.xlane.f32.xlu0 %v743
    %v772 = vpop.xlane.xlu0 %771
    %773 = vadd.xlane.f32.xlu0 %v744
    %v774 = vpop.xlane.xlu0 %773
    %775 = vadd.xlane.f32.xlu0 %v745
    %v776 = vpop.xlane.xlu0 %775
    %777 = vadd.xlane.f32.xlu0 %v746
    %v778 = vpop.xlane.xlu0 %777
    %v779 = vmul.f32 %v748, %v698
    %v780 = vmul.f32 %v750, %v698
    %v781 = vmul.f32 %v752, %v698
    %v782 = vmul.f32 %v754, %v698
    %v783 = vmul.f32 %v756, %v698
    %v784 = vmul.f32 %v758, %v698
    %v785 = vmul.f32 %v760, %v698
    %v786 = vmul.f32 %v762, %v698
    %v787 = vmul.f32 %v764, %v698
    %v788 = vmul.f32 %v766, %v698
    %v789 = vmul.f32 %v768, %v698
    %v790 = vmul.f32 %v770, %v698
    %v791 = vmul.f32 %v772, %v698
    %v792 = vmul.f32 %v774, %v698
    %v793 = vmul.f32 %v776, %v698
    %v794 = vmul.f32 %v778, %v698
    %v795 = vadd.f32 %v779, 1e-05
    %v796 = vadd.f32 %v780, 1e-05
    %v797 = vadd.f32 %v781, 1e-05
    %v798 = vadd.f32 %v782, 1e-05
    %v799 = vadd.f32 %v783, 1e-05
    %v800 = vadd.f32 %v784, 1e-05
    %v801 = vadd.f32 %v785, 1e-05
    %v802 = vadd.f32 %v786, 1e-05
    %v803 = vadd.f32 %v787, 1e-05
    %v804 = vadd.f32 %v788, 1e-05
    %v805 = vadd.f32 %v789, 1e-05
    %v806 = vadd.f32 %v790, 1e-05
    %v807 = vadd.f32 %v791, 1e-05
    %v808 = vadd.f32 %v792, 1e-05
    %v809 = vadd.f32 %v793, 1e-05
    %v810 = vadd.f32 %v794, 1e-05
    %v811 = vrsqrt.pop %v795
    %v812 = vrsqrt.pop %v796
    %v813 = vrsqrt.pop %v797
    %v814 = vrsqrt.pop %v798
    %v815 = vrsqrt.pop %v799
    %v816 = vrsqrt.pop %v800
    %v817 = vrsqrt.pop %v801
    %v818 = vrsqrt.pop %v802
    %v819 = vrsqrt.pop %v803
    %v820 = vrsqrt.pop %v804
    %v821 = vrsqrt.pop %v805
    %v822 = vrsqrt.pop %v806
    %v823 = vrsqrt.pop %v807
    %v824 = vrsqrt.pop %v808
    %v825 = vrsqrt.pop %v809
    %v826 = vrsqrt.pop %v810
    %v827 = vmul.f32 %v715, %v811
    %v828 = vmul.f32 %v716, %v812
    %v829 = vmul.f32 %v717, %v813
    %v830 = vmul.f32 %v718, %v814
    %v831 = vmul.f32 %v719, %v815
    %v832 = vmul.f32 %v720, %v816
    %v833 = vmul.f32 %v721, %v817
    %v834 = vmul.f32 %v722, %v818
    %v835 = vmul.f32 %v723, %v819
    %v836 = vmul.f32 %v724, %v820
    %v837 = vmul.f32 %v725, %v821
    %v838 = vmul.f32 %v726, %v822
    %v839 = vmul.f32 %v727, %v823
    %v840 = vmul.f32 %v728, %v824
    %v841 = vmul.f32 %v729, %v825
    %v842 = vmul.f32 %v730, %v826
    %v843 = vld [vmem:[%s6] sm:$0x1]
    %v845 = vlaneseq
    %v846 = vshrl.u32 %v845, 7
    %v847 = vsub.s32 0, %v846
    %v848 = vrot.slane %v843, %v847
    %v850 = vmul.f32 %v827, %v848
    %v851 = vmul.f32 %v828, %v848
    %v852 = vmul.f32 %v829, %v848
    %v853 = vmul.f32 %v830, %v848
    %v854 = vmul.f32 %v831, %v848
    %v855 = vmul.f32 %v832, %v848
    %v856 = vmul.f32 %v833, %v848
    %v857 = vmul.f32 %v834, %v848
    %v858 = vmul.f32 %v835, %v848
    %v859 = vmul.f32 %v836, %v848
    %v860 = vmul.f32 %v837, %v848
    %v861 = vmul.f32 %v838, %v848
    %v862 = vmul.f32 %v839, %v848
    %v863 = vmul.f32 %v840, %v848
    %v864 = vmul.f32 %v841, %v848
    %v865 = vmul.f32 %v842, %v848
    %v866 = vld [vmem:[%s7] sm:$0x1]
    %v868 = vlaneseq
    %v869 = vshrl.u32 %v868, 7
    %v870 = vsub.s32 0, %v869
    %v871 = vrot.slane %v866, %v870
    %v873 = vadd.f32 %v850, %v871
    %v874 = vadd.f32 %v851, %v871
    %v875 = vadd.f32 %v852, %v871
    %v876 = vadd.f32 %v853, %v871
    %v877 = vadd.f32 %v854, %v871
    %v878 = vadd.f32 %v855, %v871
    %v879 = vadd.f32 %v856, %v871
    %v880 = vadd.f32 %v857, %v871
    %v881 = vadd.f32 %v858, %v871
    %v882 = vadd.f32 %v859, %v871
    %v883 = vadd.f32 %v860, %v871
    %v884 = vadd.f32 %v861, %v871
    %v885 = vadd.f32 %v862, %v871
    %v886 = vadd.f32 %v863, %v871
    %v887 = vadd.f32 %v864, %v871
    %v888 = vadd.f32 %v865, %v871
    %889 = vst [vmem:[#allocation11] sm:$0xff] %v873
    %890 = vst [vmem:[#allocation11 + $0x8] sm:$0xff] %v874
    %891 = vst [vmem:[#allocation11 + $0x10] sm:$0xff] %v875
    %892 = vst [vmem:[#allocation11 + $0x18] sm:$0xff] %v876
    %893 = vst [vmem:[#allocation11 + $0x20] sm:$0xff] %v877
    %894 = vst [vmem:[#allocation11 + $0x28] sm:$0xff] %v878
    %895 = vst [vmem:[#allocation11 + $0x30] sm:$0xff] %v879
    %896 = vst [vmem:[#allocation11 + $0x38] sm:$0xff] %v880
    %897 = vst [vmem:[#allocation11 + $0x40] sm:$0xff] %v881
    %898 = vst [vmem:[#allocation11 + $0x48] sm:$0xff] %v882
    %899 = vst [vmem:[#allocation11 + $0x50] sm:$0xff] %v883
    %900 = vst [vmem:[#allocation11 + $0x58] sm:$0xff] %v884
    %901 = vst [vmem:[#allocation11 + $0x60] sm:$0xff] %v885
    %902 = vst [vmem:[#allocation11 + $0x68] sm:$0xff] %v886
    %903 = vst [vmem:[#allocation11 + $0x70] sm:$0xff] %v887
    %904 = vst [vmem:[#allocation11 + $0x78] sm:$0xff] %v888
    %v905 = vpack.c.bf16 %v110, %v109
    %v906 = vpack.c.bf16 %v112, %v111
    %v907 = vpack.c.bf16 %v114, %v113
    %v908 = vpack.c.bf16 %v116, %v115
    %v909 = vpack.c.bf16 %v118, %v117
    %v910 = vpack.c.bf16 %v120, %v119
    %v911 = vpack.c.bf16 %v122, %v121
    %v912 = vpack.c.bf16 %v124, %v123
    %v913 = vld [vmem:[#allocation10] sm:$0xff]
    %v914 = vld [vmem:[#allocation10 + $0x8] sm:$0xf]
    %v915 = vld [vmem:[#allocation10 + $0xc] sm:$0xff]
    %v916 = vld [vmem:[#allocation10 + $0x14] sm:$0xf]
    %v917 = vld [vmem:[#allocation10 + $0x18] sm:$0xff]
    %v918 = vld [vmem:[#allocation10 + $0x20] sm:$0xf]
    %v919 = vld [vmem:[#allocation10 + $0x24] sm:$0xff]
    %v920 = vld [vmem:[#allocation10 + $0x2c] sm:$0xf]
    %v921 = vld [vmem:[#allocation10 + $0x30] sm:$0xff]
    %v922 = vld [vmem:[#allocation10 + $0x38] sm:$0xf]
    %v923 = vld [vmem:[#allocation10 + $0x3c] sm:$0xff]
    %v924 = vld [vmem:[#allocation10 + $0x44] sm:$0xf]
    %v925 = vld [vmem:[#allocation10 + $0x48] sm:$0xff]
    %v926 = vld [vmem:[#allocation10 + $0x50] sm:$0xf]
    %v927 = vld [vmem:[#allocation10 + $0x54] sm:$0xff]
    %v928 = vld [vmem:[#allocation10 + $0x5c] sm:$0xf]
    %v929 = vld [vmem:[#allocation10 + $0x60] sm:$0xff]
    %v930 = vld [vmem:[#allocation10 + $0x68] sm:$0xf]
    %v931 = vld [vmem:[#allocation10 + $0x6c] sm:$0xff]
    %v932 = vld [vmem:[#allocation10 + $0x74] sm:$0xf]
    %v933 = vld [vmem:[#allocation10 + $0x78] sm:$0xff]
    %v934 = vld [vmem:[#allocation10 + $0x80] sm:$0xf]
    %v935 = vld [vmem:[#allocation10 + $0x84] sm:$0xff]
    %v936 = vld [vmem:[#allocation10 + $0x8c] sm:$0xf]
    %v937 = vld [vmem:[#allocation10 + $0x90] sm:$0xff]
    %v938 = vld [vmem:[#allocation10 + $0x98] sm:$0xf]
    %v939 = vld [vmem:[#allocation10 + $0x9c] sm:$0xff]
    %v940 = vld [vmem:[#allocation10 + $0xa4] sm:$0xf]
    %v941 = vld [vmem:[#allocation10 + $0xa8] sm:$0xff]
    %v942 = vld [vmem:[#allocation10 + $0xb0] sm:$0xf]
    %v943 = vld [vmem:[#allocation10 + $0xb4] sm:$0xff]
    %v944 = vld [vmem:[#allocation10 + $0xbc] sm:$0xf]
    %v945 = vld [vmem:[%s9] sm:$0x7]
    %v947 = vlaneseq
    %v948 = vshrl.u32 %v947, 7
    %v949 = vsub.s32 0, %v948
    %v950 = vrot.slane %v945, %v949
    %v951 = vlaneseq
    %v952 = vshrl.u32 %v951, 7
    %v953 = vsub.s32 1, %v952
    %v954 = vrot.slane %v945, %v953
    %v955 = vlaneseq
    %v956 = vshrl.u32 %v955, 7
    %v957 = vsub.s32 2, %v956
    %v958 = vrot.slane %v945, %v957
    %v994 = vunpack.c.l.b16 %v913
    %v995 = vunpack.c.h.b16 %v913
    %v996 = vunpack.c.l.b16 %v914
    %v997 = vunpack.c.l.b16 %v915
    %v998 = vunpack.c.h.b16 %v915
    %v999 = vunpack.c.l.b16 %v916
    %v1000 = vunpack.c.l.b16 %v917
    %v1001 = vunpack.c.h.b16 %v917
    %v1002 = vunpack.c.l.b16 %v918
    %v1003 = vunpack.c.l.b16 %v919
    %v1004 = vunpack.c.h.b16 %v919
    %v1005 = vunpack.c.l.b16 %v920
    %v1006 = vunpack.c.l.b16 %v921
    %v1007 = vunpack.c.h.b16 %v921
    %v1008 = vunpack.c.l.b16 %v922
    %v1009 = vunpack.c.l.b16 %v923
    %v1010 = vunpack.c.h.b16 %v923
    %v1011 = vunpack.c.l.b16 %v924
    %v1012 = vunpack.c.l.b16 %v925
    %v1013 = vunpack.c.h.b16 %v925
    %v1014 = vunpack.c.l.b16 %v926
    %v1015 = vunpack.c.l.b16 %v927
    %v1016 = vunpack.c.h.b16 %v927
    %v1017 = vunpack.c.l.b16 %v928
    %v1018 = vunpack.c.l.b16 %v929
    %v1019 = vunpack.c.h.b16 %v929
    %v1020 = vunpack.c.l.b16 %v930
    %v1021 = vunpack.c.l.b16 %v931
    %v1022 = vunpack.c.h.b16 %v931
    %v1023 = vunpack.c.l.b16 %v932
    %v1024 = vunpack.c.l.b16 %v933
    %v1025 = vunpack.c.h.b16 %v933
    %v1026 = vunpack.c.l.b16 %v934
    %v1027 = vunpack.c.l.b16 %v935
    %v1028 = vunpack.c.h.b16 %v935
    %v1029 = vunpack.c.l.b16 %v936
    %v1030 = vunpack.c.l.b16 %v937
    %v1031 = vunpack.c.h.b16 %v937
    %v1032 = vunpack.c.l.b16 %v938
    %v1033 = vunpack.c.l.b16 %v939
    %v1034 = vunpack.c.h.b16 %v939
    %v1035 = vunpack.c.l.b16 %v940
    %v1036 = vunpack.c.l.b16 %v941
    %v1037 = vunpack.c.h.b16 %v941
    %v1038 = vunpack.c.l.b16 %v942
    %v1039 = vunpack.c.l.b16 %v943
    %v1040 = vunpack.c.h.b16 %v943
    %v1041 = vunpack.c.l.b16 %v944
    %v1042 = vpack.c.b16 %v997, %v994
    %v1043 = vpack.c.b16 %v998, %v995
    %v1044 = vpack.c.b16 %v999, %v996
    %v1045 = vpack.c.b16 %v1003, %v1000
    %v1046 = vpack.c.b16 %v1004, %v1001
    %v1047 = vpack.c.b16 %v1005, %v1002
    %v1048 = vpack.c.b16 %v1009, %v1006
    %v1049 = vpack.c.b16 %v1010, %v1007
    %v1050 = vpack.c.b16 %v1011, %v1008
    %v1051 = vpack.c.b16 %v1015, %v1012
    %v1052 = vpack.c.b16 %v1016, %v1013
    %v1053 = vpack.c.b16 %v1017, %v1014
    %v1054 = vpack.c.b16 %v1021, %v1018
    %v1055 = vpack.c.b16 %v1022, %v1019
    %v1056 = vpack.c.b16 %v1023, %v1020
    %v1057 = vpack.c.b16 %v1027, %v1024
    %v1058 = vpack.c.b16 %v1028, %v1025
    %v1059 = vpack.c.b16 %v1029, %v1026
    %v1060 = vpack.c.b16 %v1033, %v1030
    %v1061 = vpack.c.b16 %v1034, %v1031
    %v1062 = vpack.c.b16 %v1035, %v1032
    %v1063 = vpack.c.b16 %v1039, %v1036
    %v1064 = vpack.c.b16 %v1040, %v1037
    %v1065 = vpack.c.b16 %v1041, %v1038
    %1090 = vmatprep.subr.bf16.mxu0 %v1043
    %1091 = vmatpush1.bf16.msra.mxu0 %v1042
    %1092 = vmatprep.subr.bf16.mxu0 %v1046
    %1093 = vmatpush1.bf16.msra.mxu0 %v1045
    %1094 = vmatprep.subr.bf16.mxu0 %v1049
    %1095 = vmatpush1.bf16.msra.mxu0 %v1048
    %1096 = vmatprep.subr.bf16.mxu0 %v1052
    %1097 = vmatpush1.bf16.msra.mxu0 %v1051
    %1098 = vmatprep.subr.bf16.mxu0 %v1055
    %1099 = vmatpush1.bf16.msra.mxu0 %v1054
    %1100 = vmatprep.subr.bf16.mxu0 %v1058
    %1101 = vmatpush1.bf16.msra.mxu0 %v1057
    %1102 = vmatprep.subr.bf16.mxu0 %v1061
    %1103 = vmatpush1.bf16.msra.mxu0 %v1060
    %1104 = vmatprep.subr.bf16.mxu0 %v1064
    %1105 = vmatpush1.bf16.msra.mxu0 %v1063
    %1106 = vmatprep.subr.bf16.mxu0 0
    %1107 = vmatpush1.bf16.msra.mxu0 0
    %1108 = vmatprep.subr.bf16.mxu0 0
    %1109 = vmatpush1.bf16.msra.mxu0 0
    %1110 = vmatprep.subr.bf16.mxu0 0
    %1111 = vmatpush1.bf16.msra.mxu0 0
    %1112 = vmatprep.subr.bf16.mxu0 0
    %1113 = vmatpush1.bf16.msra.mxu0 0
    %1114 = vmatprep.subr.bf16.mxu0 0
    %1115 = vmatpush1.bf16.msra.mxu0 0
    %1116 = vmatprep.subr.bf16.mxu0 0
    %1117 = vmatpush1.bf16.msra.mxu0 0
    %1118 = vmatprep.subr.bf16.mxu0 0
    %1119 = vmatpush1.bf16.msra.mxu0 0
    %1120 = vmatprep.subr.bf16.mxu0 0
    %1121 = vmatpush1.bf16.msra.mxu0 0
    %1122 = vmatprep.mubr.bf16.mxu0 0
    %1123 = vmatmul.mubr.bf16.gmra.mrb[0].mxu0 %v905
    %v1124 = vpop.f32.mrb[0].mxu0
    %v1125 = vadd.f32 %v950, %v1124
    %v1126 = vpop.f32.mrb[0].mxu0
    %v1127 = vadd.f32 %v954, %v1126
    %v1128 = vpop.f32.mrb[0].mxu0
    %v1129 = vadd.f32 %v950, %v1128
    %v1130 = vpop.f32.mrb[0].mxu0
    %v1131 = vadd.f32 %v954, %v1130
    %1132 = vmatprep.mubr.bf16.mxu0 0
    %1133 = vmatmul.mubr.bf16.gmra.mrb[0].mxu0 %v906
    %v1134 = vpop.f32.mrb[0].mxu0
    %v1135 = vadd.f32 %v950, %v1134
    %v1136 = vpop.f32.mrb[0].mxu0
    %v1137 = vadd.f32 %v954, %v1136
    %v1138 = vpop.f32.mrb[0].mxu0
    %v1139 = vadd.f32 %v950, %v1138
    %v1140 = vpop.f32.mrb[0].mxu0
    %v1141 = vadd.f32 %v954, %v1140
    %1142 = vmatprep.mubr.bf16.mxu0 0
    %1143 = vmatmul.mubr.bf16.gmra.mrb[0].mxu0 %v907
    %v1144 = vpop.f32.mrb[0].mxu0
    %v1145 = vadd.f32 %v950, %v1144
    %v1146 = vpop.f32.mrb[0].mxu0
    %v1147 = vadd.f32 %v954, %v1146
    %v1148 = vpop.f32.mrb[0].mxu0
    %v1149 = vadd.f32 %v950, %v1148
    %v1150 = vpop.f32.mrb[0].mxu0
    %v1151 = vadd.f32 %v954, %v1150
    %1152 = vmatprep.mubr.bf16.mxu0 0
    %1153 = vmatmul.mubr.bf16.gmra.mrb[0].mxu0 %v908
    %v1154 = vpop.f32.mrb[0].mxu0
    %v1155 = vadd.f32 %v950, %v1154
    %v1156 = vpop.f32.mrb[0].mxu0
    %v1157 = vadd.f32 %v954, %v1156
    %v1158 = vpop.f32.mrb[0].mxu0
    %v1159 = vadd.f32 %v950, %v1158
    %v1160 = vpop.f32.mrb[0].mxu0
    %v1161 = vadd.f32 %v954, %v1160
    %1162 = vmatprep.mubr.bf16.mxu0 0
    %1163 = vmatmul.mubr.bf16.gmra.mrb[0].mxu0 %v909
    %v1164 = vpop.f32.mrb[0].mxu0
    %v1165 = vadd.f32 %v950, %v1164
    %v1166 = vpop.f32.mrb[0].mxu0
    %v1167 = vadd.f32 %v954, %v1166
    %v1168 = vpop.f32.mrb[0].mxu0
    %v1169 = vadd.f32 %v950, %v1168
    %v1170 = vpop.f32.mrb[0].mxu0
    %v1171 = vadd.f32 %v954, %v1170
    %1172 = vmatprep.mubr.bf16.mxu0 0
    %1173 = vmatmul.mubr.bf16.gmra.mrb[0].mxu0 %v910
    %v1174 = vpop.f32.mrb[0].mxu0
    %v1175 = vadd.f32 %v950, %v1174
    %v1176 = vpop.f32.mrb[0].mxu0
    %v1177 = vadd.f32 %v954, %v1176
    %v1178 = vpop.f32.mrb[0].mxu0
    %v1179 = vadd.f32 %v950, %v1178
    %v1180 = vpop.f32.mrb[0].mxu0
    %v1181 = vadd.f32 %v954, %v1180
    %1182 = vmatprep.mubr.bf16.mxu0 0
    %1183 = vmatmul.mubr.bf16.gmra.mrb[0].mxu0 %v911
    %v1184 = vpop.f32.mrb[0].mxu0
    %v1185 = vadd.f32 %v950, %v1184
    %v1186 = vpop.f32.mrb[0].mxu0
    %v1187 = vadd.f32 %v954, %v1186
    %v1188 = vpop.f32.mrb[0].mxu0
    %v1189 = vadd.f32 %v950, %v1188
    %v1190 = vpop.f32.mrb[0].mxu0
    %v1191 = vadd.f32 %v954, %v1190
    %1192 = vmatprep.mubr.bf16.mxu0 0
    %1193 = vmatmul.mubr.bf16.gmra.mrb[0].mxu0 %v912
    %v1194 = vpop.f32.mrb[0].mxu0
    %v1195 = vadd.f32 %v950, %v1194
    %v1196 = vpop.f32.mrb[0].mxu0
    %v1197 = vadd.f32 %v954, %v1196
    %v1198 = vpop.f32.mrb[0].mxu0
    %v1199 = vadd.f32 %v950, %v1198
    %v1200 = vpop.f32.mrb[0].mxu0
    %v1201 = vadd.f32 %v954, %v1200
    %1202 = vdwg.mxu0
    %1203 = vmatprep.subr.bf16.mxu0 0
    %1204 = vmatpush1.bf16.msra.mxu0 %v1044
    %1205 = vmatprep.subr.bf16.mxu0 0
    %1206 = vmatpush1.bf16.msra.mxu0 %v1047
    %1207 = vmatprep.subr.bf16.mxu0 0
    %1208 = vmatpush1.bf16.msra.mxu0 %v1050
    %1209 = vmatprep.subr.bf16.mxu0 0
    %1210 = vmatpush1.bf16.msra.mxu0 %v1053
    %1211 = vmatprep.subr.bf16.mxu0 0
    %1212 = vmatpush1.bf16.msra.mxu0 %v1056
    %1213 = vmatprep.subr.bf16.mxu0 0
    %1214 = vmatpush1.bf16.msra.mxu0 %v1059
    %1215 = vmatprep.subr.bf16.mxu0 0
    %1216 = vmatpush1.bf16.msra.mxu0 %v1062
    %1217 = vmatprep.subr.bf16.mxu0 0
    %1218 = vmatpush1.bf16.msra.mxu0 %v1065
    %1219 = vmatprep.subr.bf16.mxu0 0
    %1220 = vmatpush1.bf16.msra.mxu0 0
    %1221 = vmatprep.subr.bf16.mxu0 0
    %1222 = vmatpush1.bf16.msra.mxu0 0
    %1223 = vmatprep.subr.bf16.mxu0 0
    %1224 = vmatpush1.bf16.msra.mxu0 0
    %1225 = vmatprep.subr.bf16.mxu0 0
    %1226 = vmatpush1.bf16.msra.mxu0 0
    %1227 = vmatprep.subr.bf16.mxu0 0
    %1228 = vmatpush1.bf16.msra.mxu0 0
    %1229 = vmatprep.subr.bf16.mxu0 0
    %1230 = vmatpush1.bf16.msra.mxu0 0
    %1231 = vmatprep.subr.bf16.mxu0 0
    %1232 = vmatpush1.bf16.msra.mxu0 0
    %1233 = vmatprep.subr.bf16.mxu0 0
    %1234 = vmatpush1.bf16.msra.mxu0 0
    %1235 = vmatprep.mubr.bf16.mxu0 0
    %1236 = vmatmul.mubr.bf16.gmra.mrb[0].mxu0 %v905
    %v1237 = vpop.f32.mrb[0].mxu0
    %v1238 = vadd.f32 %v958, %v1237
    %v1239 = vpop.f32.mrb[0].mxu0
    %v1240 = vpop.f32.mrb[0].mxu0
    %v1241 = vadd.f32 %v958, %v1240
    %v1242 = vpop.f32.mrb[0].mxu0
    %1243 = vmatprep.mubr.bf16.mxu0 0
    %1244 = vmatmul.mubr.bf16.gmra.mrb[0].mxu0 %v906
    %v1245 = vpop.f32.mrb[0].mxu0
    %v1246 = vadd.f32 %v958, %v1245
    %v1247 = vpop.f32.mrb[0].mxu0
    %v1248 = vpop.f32.mrb[0].mxu0
    %v1249 = vadd.f32 %v958, %v1248
    %v1250 = vpop.f32.mrb[0].mxu0
    %1251 = vmatprep.mubr.bf16.mxu0 0
    %1252 = vmatmul.mubr.bf16.gmra.mrb[0].mxu0 %v907
    %v1253 = vpop.f32.mrb[0].mxu0
    %v1254 = vadd.f32 %v958, %v1253
    %v1255 = vpop.f32.mrb[0].mxu0
    %v1256 = vpop.f32.mrb[0].mxu0
    %v1257 = vadd.f32 %v958, %v1256
    %v1258 = vpop.f32.mrb[0].mxu0
    %1259 = vmatprep.mubr.bf16.mxu0 0
    %1260 = vmatmul.mubr.bf16.gmra.mrb[0].mxu0 %v908
    %v1261 = vpop.f32.mrb[0].mxu0
    %v1262 = vadd.f32 %v958, %v1261
    %v1263 = vpop.f32.mrb[0].mxu0
    %v1264 = vpop.f32.mrb[0].mxu0
    %v1265 = vadd.f32 %v958, %v1264
    %v1266 = vpop.f32.mrb[0].mxu0
    %1267 = vmatprep.mubr.bf16.mxu0 0
    %1268 = vmatmul.mubr.bf16.gmra.mrb[0].mxu0 %v909
    %v1269 = vpop.f32.mrb[0].mxu0
    %v1270 = vadd.f32 %v958, %v1269
    %v1271 = vpop.f32.mrb[0].mxu0
    %v1272 = vpop.f32.mrb[0].mxu0
    %v1273 = vadd.f32 %v958, %v1272
    %v1274 = vpop.f32.mrb[0].mxu0
    %1275 = vmatprep.mubr.bf16.mxu0 0
    %1276 = vmatmul.mubr.bf16.gmra.mrb[0].mxu0 %v910
    %v1277 = vpop.f32.mrb[0].mxu0
    %v1278 = vadd.f32 %v958, %v1277
    %v1279 = vpop.f32.mrb[0].mxu0
    %v1280 = vpop.f32.mrb[0].mxu0
    %v1281 = vadd.f32 %v958, %v1280
    %v1282 = vpop.f32.mrb[0].mxu0
    %1283 = vmatprep.mubr.bf16.mxu0 0
    %1284 = vmatmul.mubr.bf16.gmra.mrb[0].mxu0 %v911
    %v1285 = vpop.f32.mrb[0].mxu0
    %v1286 = vadd.f32 %v958, %v1285
    %v1287 = vpop.f32.mrb[0].mxu0
    %v1288 = vpop.f32.mrb[0].mxu0
    %v1289 = vadd.f32 %v958, %v1288
    %v1290 = vpop.f32.mrb[0].mxu0
    %1291 = vmatprep.mubr.bf16.mxu0 0
    %1292 = vmatmul.mubr.bf16.gmra.mrb[0].mxu0 %v912
    %v1293 = vpop.f32.mrb[0].mxu0
    %v1294 = vadd.f32 %v958, %v1293
    %v1295 = vpop.f32.mrb[0].mxu0
    %v1296 = vpop.f32.mrb[0].mxu0
    %v1297 = vadd.f32 %v958, %v1296
    %v1298 = vpop.f32.mrb[0].mxu0
    %1299 = vdwg.mxu0
    %v1300 = vmul.f32 %v1125, 0.17677669
    %v1301 = vmul.f32 %v1129, 0.17677669
    %v1302 = vmul.f32 %v1135, 0.17677669
    %v1303 = vmul.f32 %v1139, 0.17677669
    %v1304 = vmul.f32 %v1145, 0.17677669
    %v1305 = vmul.f32 %v1149, 0.17677669
    %v1306 = vmul.f32 %v1155, 0.17677669
    %v1307 = vmul.f32 %v1159, 0.17677669
    %v1308 = vmul.f32 %v1165, 0.17677669
    %v1309 = vmul.f32 %v1169, 0.17677669
    %v1310 = vmul.f32 %v1175, 0.17677669
    %v1311 = vmul.f32 %v1179, 0.17677669
    %v1312 = vmul.f32 %v1185, 0.17677669
    %v1313 = vmul.f32 %v1189, 0.17677669
    %v1314 = vmul.f32 %v1195, 0.17677669
    %v1315 = vmul.f32 %v1199, 0.17677669
    %v1316 = vpack.c.bf16 %v1301, %v1300
    %v1317 = vpack.c.bf16 %v1303, %v1302
    %v1318 = vpack.c.bf16 %v1305, %v1304
    %v1319 = vpack.c.bf16 %v1307, %v1306
    %v1320 = vpack.c.bf16 %v1309, %v1308
    %v1321 = vpack.c.bf16 %v1311, %v1310
    %v1322 = vpack.c.bf16 %v1313, %v1312
    %v1323 = vpack.c.bf16 %v1315, %v1314
    %v1332 = vunpack.c.l.b16 %v1316
    %v1333 = vunpack.c.h.b16 %v1316
    %v1334 = vunpack.c.l.b16 %v1317
    %v1335 = vunpack.c.h.b16 %v1317
    %v1336 = vunpack.c.l.b16 %v1318
    %v1337 = vunpack.c.h.b16 %v1318
    %v1338 = vunpack.c.l.b16 %v1319
    %v1339 = vunpack.c.h.b16 %v1319
    %v1340 = vunpack.c.l.b16 %v1320
    %v1341 = vunpack.c.h.b16 %v1320
    %v1342 = vunpack.c.l.b16 %v1321
    %v1343 = vunpack.c.h.b16 %v1321
    %v1344 = vunpack.c.l.b16 %v1322
    %v1345 = vunpack.c.h.b16 %v1322
    %v1346 = vunpack.c.l.b16 %v1323
    %v1347 = vunpack.c.h.b16 %v1323
    %v1348 = vpack.c.b16 %v1332, %v1332
    %v1349 = vpack.c.b16 %v1333, %v1333
    %v1350 = vpack.c.b16 %v1334, %v1334
    %v1351 = vpack.c.b16 %v1335, %v1335
    %v1352 = vpack.c.b16 %v1336, %v1336
    %v1353 = vpack.c.b16 %v1337, %v1337
    %v1354 = vpack.c.b16 %v1338, %v1338
    %v1355 = vpack.c.b16 %v1339, %v1339
    %v1356 = vpack.c.b16 %v1340, %v1340
    %v1357 = vpack.c.b16 %v1341, %v1341
    %v1358 = vpack.c.b16 %v1342, %v1342
    %v1359 = vpack.c.b16 %v1343, %v1343
    %v1360 = vpack.c.b16 %v1344, %v1344
    %v1361 = vpack.c.b16 %v1345, %v1345
    %v1362 = vpack.c.b16 %v1346, %v1346
    %v1363 = vpack.c.b16 %v1347, %v1347
    %1380 = vst [vmem:[#allocation12] sm:$0xf] %v1348
    %1381 = vst [vmem:[#allocation12 + $0x4] sm:$0xf] %v1349
    %1382 = vst [vmem:[#allocation12 + $0x8] sm:$0xf] %v1350
    %1383 = vst [vmem:[#allocation12 + $0xc] sm:$0xf] %v1351
    %1384 = vst [vmem:[#allocation12 + $0x10] sm:$0xf] %v1352
    %1385 = vst [vmem:[#allocation12 + $0x14] sm:$0xf] %v1353
    %1386 = vst [vmem:[#allocation12 + $0x18] sm:$0xf] %v1354
    %1387 = vst [vmem:[#allocation12 + $0x1c] sm:$0xf] %v1355
    %1388 = vst [vmem:[#allocation12 + $0x20] sm:$0xf] %v1356
    %1389 = vst [vmem:[#allocation12 + $0x24] sm:$0xf] %v1357
    %1390 = vst [vmem:[#allocation12 + $0x28] sm:$0xf] %v1358
    %1391 = vst [vmem:[#allocation12 + $0x2c] sm:$0xf] %v1359
    %1392 = vst [vmem:[#allocation12 + $0x30] sm:$0xf] %v1360
    %1393 = vst [vmem:[#allocation12 + $0x34] sm:$0xf] %v1361
    %1394 = vst [vmem:[#allocation12 + $0x38] sm:$0xf] %v1362
    %1395 = vst [vmem:[#allocation12 + $0x3c] sm:$0xf] %v1363
    %v1396 = vpack.c.bf16 %v1131, %v1127
    %v1397 = vpack.c.bf16 %v1241, %v1238
    %v1398 = vpack.c.bf16 %v1141, %v1137
    %v1399 = vpack.c.bf16 %v1249, %v1246
    %v1400 = vpack.c.bf16 %v1151, %v1147
    %v1401 = vpack.c.bf16 %v1257, %v1254
    %v1402 = vpack.c.bf16 %v1161, %v1157
    %v1403 = vpack.c.bf16 %v1265, %v1262
    %v1404 = vpack.c.bf16 %v1171, %v1167
    %v1405 = vpack.c.bf16 %v1273, %v1270
    %v1406 = vpack.c.bf16 %v1181, %v1177
    %v1407 = vpack.c.bf16 %v1281, %v1278
    %v1408 = vpack.c.bf16 %v1191, %v1187
    %v1409 = vpack.c.bf16 %v1289, %v1286
    %v1410 = vpack.c.bf16 %v1201, %v1197
    %v1411 = vpack.c.bf16 %v1297, %v1294
    %v1428 = vunpack.c.l.b16 %v1396
    %v1429 = vunpack.c.l.b16 %v1397
    %v1430 = vunpack.c.h.b16 %v1396
    %v1431 = vunpack.c.h.b16 %v1397
    %v1432 = vunpack.c.l.b16 %v1398
    %v1433 = vunpack.c.l.b16 %v1399
    %v1434 = vunpack.c.h.b16 %v1398
    %v1435 = vunpack.c.h.b16 %v1399
    %v1436 = vunpack.c.l.b16 %v1400
    %v1437 = vunpack.c.l.b16 %v1401
    %v1438 = vunpack.c.h.b16 %v1400
    %v1439 = vunpack.c.h.b16 %v1401
    %v1440 = vunpack.c.l.b16 %v1402
    %v1441 = vunpack.c.l.b16 %v1403
    %v1442 = vunpack.c.h.b16 %v1402
    %v1443 = vunpack.c.h.b16 %v1403
    %v1444 = vunpack.c.l.b16 %v1404
    %v1445 = vunpack.c.l.b16 %v1405
    %v1446 = vunpack.c.h.b16 %v1404
    %v1447 = vunpack.c.h.b16 %v1405
    %v1448 = vunpack.c.l.b16 %v1406
    %v1449 = vunpack.c.l.b16 %v1407
    %v1450 = vunpack.c.h.b16 %v1406
    %v1451 = vunpack.c.h.b16 %v1407
    %v1452 = vunpack.c.l.b16 %v1408
    %v1453 = vunpack.c.l.b16 %v1409
    %v1454 = vunpack.c.h.b16 %v1408
    %v1455 = vunpack.c.h.b16 %v1409
    %v1456 = vunpack.c.l.b16 %v1410
    %v1457 = vunpack.c.l.b16 %v1411
    %v1458 = vunpack.c.h.b16 %v1410
    %v1459 = vunpack.c.h.b16 %v1411
    %v1460 = vpack.c.b16 %v1429, %v1428
    %v1461 = vpack.c.b16 %v1431, %v1430
    %v1462 = vpack.c.b16 %v1433, %v1432
    %v1463 = vpack.c.b16 %v1435, %v1434
    %v1464 = vpack.c.b16 %v1437, %v1436
    %v1465 = vpack.c.b16 %v1439, %v1438
    %v1466 = vpack.c.b16 %v1441, %v1440
    %v1467 = vpack.c.b16 %v1443, %v1442
    %v1468 = vpack.c.b16 %v1445, %v1444
    %v1469 = vpack.c.b16 %v1447, %v1446
    %v1470 = vpack.c.b16 %v1449, %v1448
    %v1471 = vpack.c.b16 %v1451, %v1450
    %v1472 = vpack.c.b16 %v1453, %v1452
    %v1473 = vpack.c.b16 %v1455, %v1454
    %v1474 = vpack.c.b16 %v1457, %v1456
    %v1475 = vpack.c.b16 %v1459, %v1458
    %1492 = vst [vmem:[#allocation14] sm:$0xff] %v1460
    %1493 = vst [vmem:[#allocation14 + $0x8] sm:$0xff] %v1461
    %1494 = vst [vmem:[#allocation14 + $0x10] sm:$0xff] %v1462
    %1495 = vst [vmem:[#allocation14 + $0x18] sm:$0xff] %v1463
    %1496 = vst [vmem:[#allocation14 + $0x20] sm:$0xff] %v1464
    %1497 = vst [vmem:[#allocation14 + $0x28] sm:$0xff] %v1465
    %1498 = vst [vmem:[#allocation14 + $0x30] sm:$0xff] %v1466
    %1499 = vst [vmem:[#allocation14 + $0x38] sm:$0xff] %v1467
    %1500 = vst [vmem:[#allocation14 + $0x40] sm:$0xff] %v1468
    %1501 = vst [vmem:[#allocation14 + $0x48] sm:$0xff] %v1469
    %1502 = vst [vmem:[#allocation14 + $0x50] sm:$0xff] %v1470
    %1503 = vst [vmem:[#allocation14 + $0x58] sm:$0xff] %v1471
    %1504 = vst [vmem:[#allocation14 + $0x60] sm:$0xff] %v1472
    %1505 = vst [vmem:[#allocation14 + $0x68] sm:$0xff] %v1473
    %1506 = vst [vmem:[#allocation14 + $0x70] sm:$0xff] %v1474
    %1507 = vst [vmem:[#allocation14 + $0x78] sm:$0xff] %v1475
    // Predicated region
    $region62: #{tpu_custom_call.1} parent=1 // pred_check
      _
    $region63: #{tpu_custom_call.1} parent=1 // pred_check_branch
      %1509 = sbr.rel (0) target = $region65
    $region64: #{tpu_custom_call.1} parent=1 // pred_region
      %s1511 = ssub.s32 2048, 2048
      %1512 = vsyncadd [#allocation4], %s1511
      %s1513 = sshll.u32 [#allocation11], 4
      %s1514 = int_to_ptr.vmem [resolvable:$true] %s1513
      %1519 = dma.vmem_to_hbm [thread:$0]  %s1514, 2048, %s10, [#allocation4], 128, 128, 8
    $region65: #{tpu_custom_call.1} parent=1 // pred_fallthru
      _
    // Predicated region
    $region66: #{tpu_custom_call.1} parent=1 // pred_check
      _
    $region67: #{tpu_custom_call.1} parent=1 // pred_check_branch
      %1521 = sbr.rel (0) target = $region69
    $region68: #{tpu_custom_call.1} parent=1 // pred_region
      %s1523 = ssub.s32 1024, 1024
      %1524 = vsyncadd [#allocation13], %s1523
      %s1525 = sshll.u32 [#allocation12], 4
      %s1526 = int_to_ptr.vmem [resolvable:$true] %s1525
      %1531 = dma.vmem_to_hbm [thread:$0]  %s1526, 1024, %s11, [#allocation13], 64, 64, 4
    $region69: #{tpu_custom_call.1} parent=1 // pred_fallthru
      _
    // Predicated region
    $region70: #{tpu_custom_call.1} parent=1 // pred_check
      _
    $region71: #{tpu_custom_call.1} parent=1 // pred_check_branch
      %1533 = sbr.rel (0) target = $region73
    $region72: #{tpu_custom_call.1} parent=1 // pred_region
      %s1535 = ssub.s32 2048, 2048
      %1536 = vsyncadd [#allocation13], %s1535
      %s1537 = sshll.u32 [#allocation14], 4
      %s1538 = int_to_ptr.vmem [resolvable:$true] %s1537
      %1543 = dma.vmem_to_hbm [thread:$0]  %s1538, 2048, %s12, [#allocation13], 128, 128, 8
    $region73: #{tpu_custom_call.1} parent=1 // pred_fallthru
      _
    // Predicated region
    $region74: #{tpu_custom_call.1} parent=1 // pred_check
      _
    $region75: #{tpu_custom_call.1} parent=1 // pred_check_branch
      %1545 = sbr.rel (0) target = $region77
    $region76: #{tpu_custom_call.1} parent=1 // pred_region
      %1546 = dma.done [#allocation4], 2048
    $region77: #{tpu_custom_call.1} parent=1 // pred_fallthru
      _
    // Predicated region
    $region78: #{tpu_custom_call.1} parent=1 // pred_check
      _
    $region79: #{tpu_custom_call.1} parent=1 // pred_check_branch
      %1548 = sbr.rel (0) target = $region81
    $region80: #{tpu_custom_call.1} parent=1 // pred_region
      %1549 = dma.done [#allocation13], 1024
    $region81: #{tpu_custom_call.1} parent=1 // pred_fallthru
      _
    // Predicated region
    $region82: #{tpu_custom_call.1} parent=1 // pred_check
      _
    $region83: #{tpu_custom_call.1} parent=1 // pred_check_branch
      %1551 = sbr.rel (0) target = $region85
    $region84: #{tpu_custom_call.1} parent=1 // pred_region
      %1552 = dma.done [#allocation13], 2048
    $region85: #{tpu_custom_call.1} parent=1 // pred_fallthru
      _
    %1553 = vsyncpa [#allocation3], 1
    %1554 = vsyncpa [#allocation6], 1
    %1555 = vsyncpa [#allocation9], 1
    %1556 = vsyncpa [#allocation4], 1
    %1557 = vsyncpa [#allocation13], 1

</llo_original>
